<compile_context>
chip_gen: v7x
topology: tpu7x:2x2x1
jax: 0.10.0
libtpu: 0.0.40
codegen_flags: <defaults>
</compile_context>

<pallas_src>
import math

import jax
import jax.numpy as jnp
from jax.experimental import pallas as pl
from jax.experimental.pallas import tpu as pltpu

# ------------------------- model hyper-parameters ---------------------------
STATE_DIM = 16
ACTION_DIM = 8
HIDDEN_DIM = 128
BLOCK_NUM = 2
TIME_EMB = 256            # frequency_embedding_size == t_embedder hidden_size
MLP_MULT = 4              # SimbaBlock expansion
EPS = 1e-5                # nn.LayerNorm default eps
BATCH = 8

# padded widths / packed-bias layout (all lane offsets are multiples of 128)
OUT_PAD = 128                               # fc_out lanes padded 8 -> 128
AS_DIM = ACTION_DIM + STATE_DIM             # 24  ([a | state] merged fc_in slice)
AS_PAD = 32                                 # padded contraction dim for fc_in
OFF_TB1 = 0
OFF_TB2 = OFF_TB1 + TIME_EMB                # 256
OFF_BIN = OFF_TB2 + TIME_EMB                # 512
OFF_BOUT = OFF_BIN + HIDDEN_DIM             # 640
OFF_BLK = OFF_BOUT + OUT_PAD                # 768
BLK_STRIDE = 3 * HIDDEN_DIM + MLP_MULT * HIDDEN_DIM   # g|beta|b1|b2 = 896
PACK = OFF_BLK + BLOCK_NUM * BLK_STRIDE     # 2560


def _layernorm_noaffine(x, eps=EPS):
    mu = jnp.mean(x, axis=-1, keepdims=True)
    var = jnp.mean((x - mu) ** 2, axis=-1, keepdims=True)
    return (x - mu) * jax.lax.rsqrt(var + eps)


# ------------------------------ Pallas kernel -------------------------------
def diffusion_policy_kernel(
    # data
    tfreq_ref, as_ref,
    # bf16 weights
    tw1_ref, tw2_ref, win_t_ref, win_as_ref, blk_w1_ref, blk_w2_ref, wout_ref,
    # packed f32 biases / LN affine
    bias_ref,
    # outputs
    act_ref, out_ref,
):
    f32 = jnp.float32
    bf16 = jnp.bfloat16

    def bias(off, width):                      # static 128-aligned slice of pack
        return bias_ref[:, off:off + width]

    def dot(x, w):                             # bf16 MXU, f32 accumulation
        return jnp.dot(x.astype(bf16), w, preferred_element_type=f32)

    # --- TimestepEmbedder.mlp : Linear -> SiLU -> Linear ---
    h = dot(tfreq_ref[...], tw1_ref[...]) + bias(OFF_TB1, TIME_EMB)
    h = h * (1.0 / (1.0 + jnp.exp(-h)))                       # SiLU
    t_emb = dot(h, tw2_ref[...]) + bias(OFF_TB2, TIME_EMB)

    # --- fc_in on cat([a, t_emb, state], 1): one (256,128) dot for t_emb and
    #     one merged zero-padded (32,128) dot for [a | state] ---
    x = (dot(t_emb, win_t_ref[...])
         + dot(as_ref[...], win_as_ref[...])
         + bias(OFF_BIN, HIDDEN_DIM))

    # --- fc_mid : BLOCK_NUM SimbaBlocks (pre-LN residual MLP), static unroll ---
    for i in range(BLOCK_NUM):
        boff = OFF_BLK + i * BLK_STRIDE
        xn = (_layernorm_noaffine(x) * bias(boff, HIDDEN_DIM)
              + bias(boff + HIDDEN_DIM, HIDDEN_DIM))
        h1 = dot(xn, blk_w1_ref[i]) + bias(boff + 2 * HIDDEN_DIM,
                                           MLP_MULT * HIDDEN_DIM)
        h1 = jnp.maximum(h1, 0.0)                             # ReLU
        x = x + dot(h1, blk_w2_ref[i]) + bias(
            boff + 2 * HIDDEN_DIM + MLP_MULT * HIDDEN_DIM, HIDDEN_DIM)

    # --- final LayerNorm (elementwise_affine=False) ---
    x = _layernorm_noaffine(x)
    act_ref[...] = x                                          # result_dict['activation']

    # --- fc_out (padded to 128 lanes -> unmasked lane-dense store) ---
    out_ref[...] = dot(x, wout_ref[...]) + bias(OFF_BOUT, OUT_PAD)


# ------------------------------ host-side glue -------------------------------
def timestep_embedding(t, dim=TIME_EMB, max_period=10000):
    """Sinusoidal embedding (matches TimestepEmbedder.timestep_embedding)."""
    half = dim // 2
    freqs = jnp.exp(-math.log(max_period) * jnp.arange(half, dtype=jnp.float32) / half)
    args = t[:, None].astype(jnp.float32) * freqs[None]
    return jnp.concatenate([jnp.cos(args), jnp.sin(args)], axis=-1)


def init_params(key):
    """f32 'master' parameters mirroring the PyTorch module layout."""
    ks = jax.random.split(key, 16)

    def w(k, shape, fan_in):
        lim = 1.0 / math.sqrt(fan_in)
        return jax.random.uniform(k, shape, jnp.float32, -lim, lim)

    in_dim = ACTION_DIM + TIME_EMB + STATE_DIM
    return {
        # TimestepEmbedder MLP
        "tw1": w(ks[0], (TIME_EMB, TIME_EMB), TIME_EMB),
        "tb1": w(ks[1], (1, TIME_EMB), TIME_EMB),
        "tw2": w(ks[2], (TIME_EMB, TIME_EMB), TIME_EMB),
        "tb2": w(ks[3], (1, TIME_EMB), TIME_EMB),
        # fc_in  (rows ordered to match cat([a, t_emb, state], 1))
        "win": w(ks[4], (in_dim, HIDDEN_DIM), in_dim),
        "bin": w(ks[5], (1, HIDDEN_DIM), in_dim),
        # SimbaBlocks
        "blk_g": jnp.ones((BLOCK_NUM, 1, HIDDEN_DIM), jnp.float32),
        "blk_beta": jnp.zeros((BLOCK_NUM, 1, HIDDEN_DIM), jnp.float32),
        "blk_w1": w(ks[6], (BLOCK_NUM, HIDDEN_DIM, MLP_MULT * HIDDEN_DIM), HIDDEN_DIM),
        "blk_b1": w(ks[7], (BLOCK_NUM, 1, MLP_MULT * HIDDEN_DIM), HIDDEN_DIM),
        "blk_w2": w(ks[8], (BLOCK_NUM, MLP_MULT * HIDDEN_DIM, HIDDEN_DIM), MLP_MULT * HIDDEN_DIM),
        "blk_b2": w(ks[9], (BLOCK_NUM, 1, HIDDEN_DIM), MLP_MULT * HIDDEN_DIM),
        # fc_out
        "wout": w(ks[10], (HIDDEN_DIM, ACTION_DIM), HIDDEN_DIM),
        "bout": w(ks[11], (1, ACTION_DIM), HIDDEN_DIM),
    }


def prepare_params(p):
    """Kernel-ready params: bf16 weights, padded fc_in/fc_out, one packed bias row."""
    bf16 = jnp.bfloat16
    win = p["win"]
    win_t = win[ACTION_DIM:ACTION_DIM + TIME_EMB]                       # (256, 128)
    win_as = jnp.concatenate(
        [win[:ACTION_DIM], win[ACTION_DIM + TIME_EMB:]], axis=0)        # (24, 128)
    win_as = jnp.pad(win_as, ((0, AS_PAD - AS_DIM), (0, 0)))            # (32, 128)
    wout = jnp.pad(p["wout"], ((0, 0), (0, OUT_PAD - ACTION_DIM)))      # (128, 128)
    bout = jnp.pad(p["bout"], ((0, 0), (0, OUT_PAD - ACTION_DIM)))      # (1, 128)

    pieces = [p["tb1"], p["tb2"], p["bin"], bout]
    for i in range(BLOCK_NUM):
        pieces += [p["blk_g"][i], p["blk_beta"][i], p["blk_b1"][i], p["blk_b2"][i]]
    bias_pack = jnp.concatenate(pieces, axis=1).astype(jnp.float32)     # (1, PACK)
    assert bias_pack.shape == (1, PACK)

    return {
        "tw1": p["tw1"].astype(bf16), "tw2": p["tw2"].astype(bf16),
        "win_t": win_t.astype(bf16), "win_as": win_as.astype(bf16),
        "blk_w1": p["blk_w1"].astype(bf16), "blk_w2": p["blk_w2"].astype(bf16),
        "wout": wout.astype(bf16),
        "bias_pack": bias_pack,
    }


_WEIGHT_ORDER = ("tw1", "tw2", "win_t", "win_as", "blk_w1", "blk_w2", "wout", "bias_pack")


@jax.jit
def diffusion_policy_forward(prep, a, t, state):
    """Returns dict with 'activation' (B, hidden) and 'output' (B, action_dim)."""
    f32 = jnp.float32
    B = a.shape[0]
    tfreq = timestep_embedding(t)                                       # (B, 256)
    a_s = jnp.concatenate([a, state], axis=1).astype(f32)               # (B, 24)
    a_s = jnp.pad(a_s, ((0, 0), (0, AS_PAD - AS_DIM)))                  # (B, 32)

    # batch-row grid: single step at small B; shards across TCs (v7x) at large B
    BM = B if B <= 128 else 128
    assert B % BM == 0, "batch must be a multiple of the row tile"
    grid = (B // BM,)

    def row_spec(width):
        return pl.BlockSpec((BM, width), lambda i: (i, 0))

    def resident(shape):                      # weights: full block, constant index
        zeros = (0,) * len(shape)
        return pl.BlockSpec(shape, lambda i, z=zeros: z)

    weight_args = tuple(prep[k] for k in _WEIGHT_ORDER)

    act, out_padded = pl.pallas_call(
        diffusion_policy_kernel,
        grid=grid,
        out_shape=(
            jax.ShapeDtypeStruct((B, HIDDEN_DIM), f32),
            jax.ShapeDtypeStruct((B, OUT_PAD), f32),
        ),
        in_specs=[row_spec(TIME_EMB), row_spec(AS_PAD)]
                 + [resident(w.shape) for w in weight_args],
        out_specs=(row_spec(HIDDEN_DIM), row_spec(OUT_PAD)),
        compiler_params=pltpu.CompilerParams(dimension_semantics=("parallel",)),
    )(tfreq, a_s, *weight_args)

    return {"activation": act, "output": out_padded[:, :ACTION_DIM]}


# -------------------------- pure-JAX reference checks -------------------------
def reference_forward_f32(params, a, t, state):
    """Original module semantics in full f32 (master weights)."""
    tfreq = timestep_embedding(t)
    h = tfreq @ params["tw1"] + params["tb1"]
    h = h * jax.nn.sigmoid(h)
    t_emb = h @ params["tw2"] + params["tb2"]
    x = jnp.concatenate([a, t_emb, state], axis=1)
    x = x @ params["win"] + params["bin"]
    for i in range(BLOCK_NUM):
        xn = _layernorm_noaffine(x) * params["blk_g"][i] + params["blk_beta"][i]
        h1 = jnp.maximum(xn @ params["blk_w1"][i] + params["blk_b1"][i], 0.0)
        x = x + h1 @ params["blk_w2"][i] + params["blk_b2"][i]
    x = _layernorm_noaffine(x)
    return {"activation": x, "output": x @ params["wout"] + params["bout"]}


def reference_forward_bf16(prep, a, t, state):
    """Mirrors the kernel's bf16-weight / f32-accumulate arithmetic exactly."""
    bf16, f32 = jnp.bfloat16, jnp.float32
    dot = lambda x, w: jnp.dot(x.astype(bf16), w, preferred_element_type=f32)
    b = prep["bias_pack"]
    bias = lambda off, width: b[:, off:off + width]

    tfreq = timestep_embedding(t)
    a_s = jnp.pad(jnp.concatenate([a, state], axis=1),
                  ((0, 0), (0, AS_PAD - AS_DIM)))
    h = dot(tfreq, prep["tw1"]) + bias(OFF_TB1, TIME_EMB)
    h = h * (1.0 / (1.0 + jnp.exp(-h)))
    t_emb = dot(h, prep["tw2"]) + bias(OFF_TB2, TIME_EMB)
    x = dot(t_emb, prep["win_t"]) + dot(a_s, prep["win_as"]) + bias(OFF_BIN, HIDDEN_DIM)
    for i in range(BLOCK_NUM):
        boff = OFF_BLK + i * BLK_STRIDE
        xn = _layernorm_noaffine(x) * bias(boff, HIDDEN_DIM) + bias(boff + HIDDEN_DIM, HIDDEN_DIM)
        h1 = jnp.maximum(dot(xn, prep["blk_w1"][i])
                         + bias(boff + 2 * HIDDEN_DIM, MLP_MULT * HIDDEN_DIM), 0.0)
        x = x + dot(h1, prep["blk_w2"][i]) + bias(
            boff + 2 * HIDDEN_DIM + MLP_MULT * HIDDEN_DIM, HIDDEN_DIM)
    x = _layernorm_noaffine(x)
    out = dot(x, prep["wout"]) + bias(OFF_BOUT, OUT_PAD)
    return {"activation": x, "output": out[:, :ACTION_DIM]}


def _rel_err(x, y):
    return float(jnp.linalg.norm(x - y) / (jnp.linalg.norm(y) + 1e-12))


if __name__ == "__main__":
    key = jax.random.PRNGKey(0)
    kp, ka, kt, ks = jax.random.split(key, 4)

    master = init_params(kp)
    prep = prepare_params(master)
    a = jax.random.normal(ka, (BATCH, ACTION_DIM), jnp.float32)
    t = jax.random.uniform(kt, (BATCH,), jnp.float32)           # fractional timesteps
    state = jax.random.normal(ks, (BATCH, STATE_DIM), jnp.float32)

    out = diffusion_policy_forward(prep, a, t, state)
    jax.block_until_ready(out)

    # tight check vs the bf16-mirrored reference (validates the kernel itself)
    ref_q = reference_forward_bf16(prep, a, t, state)
    assert jnp.allclose(out["activation"], ref_q["activation"], atol=1e-3, rtol=1e-3)
    assert jnp.allclose(out["output"], ref_q["output"], atol=1e-3, rtol=1e-3)

    # loose check vs full-f32 module semantics (bf16 quantization error only)
    ref_f = reference_forward_f32(master, a, t, state)
    assert _rel_err(out["activation"], ref_f["activation"]) < 5e-2
    assert _rel_err(out["output"], ref_f["output"]) < 5e-2

    print("KERNEL_OK")
</pallas_src>

<mosaic_0001>
module attributes {stable_mosaic.version = 11 : i64} {
  func.func @diffusion_policy_kernel(%arg0: i32, %arg1: memref<8x256xf32, #tpu.memory_space<vmem>>, %arg2: memref<8x32xf32, #tpu.memory_space<vmem>>, %arg3: memref<256x256xbf16, #tpu.memory_space<vmem>>, %arg4: memref<256x256xbf16, #tpu.memory_space<vmem>>, %arg5: memref<256x128xbf16, #tpu.memory_space<vmem>>, %arg6: memref<32x128xbf16, #tpu.memory_space<vmem>>, %arg7: memref<2x128x512xbf16, #tpu.memory_space<vmem>>, %arg8: memref<2x512x128xbf16, #tpu.memory_space<vmem>>, %arg9: memref<128x128xbf16, #tpu.memory_space<vmem>>, %arg10: memref<1x2560xf32, #tpu.memory_space<vmem>>, %arg11: memref<8x128xf32, #tpu.memory_space<vmem>>, %arg12: memref<8x128xf32, #tpu.memory_space<vmem>>) attributes {dimension_semantics = [#tpu.dimension_semantics<parallel>], iteration_bounds = array<i64: 1>, scalar_prefetch = 0 : i64, scratch_operands = 0 : i64, tpu.core_type = #tpu.core_type<tc>, window_params = [{transform_indices = @transform_0, window_bounds = array<i64: 8, 256>}, {transform_indices = @transform_1, window_bounds = array<i64: 8, 32>}, {pipeline_mode = #tpu.pipeline_mode<synchronous>, transform_indices = @transform_2, window_bounds = array<i64: 256, 256>}, {pipeline_mode = #tpu.pipeline_mode<synchronous>, transform_indices = @transform_3, window_bounds = array<i64: 256, 256>}, {pipeline_mode = #tpu.pipeline_mode<synchronous>, transform_indices = @transform_4, window_bounds = array<i64: 256, 128>}, {pipeline_mode = #tpu.pipeline_mode<synchronous>, transform_indices = @transform_5, window_bounds = array<i64: 32, 128>}, {pipeline_mode = #tpu.pipeline_mode<synchronous>, transform_indices = @transform_6, window_bounds = array<i64: 2, 128, 512>}, {pipeline_mode = #tpu.pipeline_mode<synchronous>, transform_indices = @transform_7, window_bounds = array<i64: 2, 512, 128>}, {pipeline_mode = #tpu.pipeline_mode<synchronous>, transform_indices = @transform_8, window_bounds = array<i64: 128, 128>}, {pipeline_mode = #tpu.pipeline_mode<synchronous>, transform_indices = @transform_9, window_bounds = array<i64: 1, 2560>}, {transform_indices = @transform_10, window_bounds = array<i64: 8, 128>}, {transform_indices = @transform_11, window_bounds = array<i64: 8, 128>}]} {
    %c0 = arith.constant 0 : index
    %c0_0 = arith.constant 0 : index
    %0 = vector.load %arg1[%c0, %c0_0] : memref<8x256xf32, #tpu.memory_space<vmem>>, vector<8x256xf32>
    %c0_1 = arith.constant 0 : index
    %c0_2 = arith.constant 0 : index
    %1 = vector.load %arg3[%c0_1, %c0_2] : memref<256x256xbf16, #tpu.memory_space<vmem>>, vector<256x256xbf16>
    %2 = arith.truncf %0 : vector<8x256xf32> to vector<8x256xbf16>
    %cst = arith.constant dense<0.000000e+00> : vector<8x256xf32>
    %3 = tpu.matmul %2, %1, %cst {dimension_numbers = #tpu.dot_dimension_numbers<[1], [0], [0], [1], [0, 0, 1, 1], [], []>} : vector<8x256xbf16>, vector<256x256xbf16>, vector<8x256xf32> -> vector<8x256xf32>
    %c0_3 = arith.constant 0 : index
    %c0_4 = arith.constant 0 : index
    %4 = vector.load %arg10[%c0_3, %c0_4] : memref<1x2560xf32, #tpu.memory_space<vmem>>, vector<1x256xf32>
    %5 = vector.broadcast %4 : vector<1x256xf32> to vector<8x256xf32>
    %6 = arith.addf %3, %5 : vector<8x256xf32>
    %cst_5 = arith.constant 0.000000e+00 : f32
    %7 = vector.broadcast %cst_5 : f32 to vector<8x256xf32>
    %8 = arith.subf %7, %6 : vector<8x256xf32>
    %9 = math.exp %8 : vector<8x256xf32>
    %cst_6 = arith.constant 1.000000e+00 : f32
    %10 = vector.broadcast %cst_6 : f32 to vector<8x256xf32>
    %11 = arith.addf %10, %9 : vector<8x256xf32>
    %cst_7 = arith.constant 1.000000e+00 : f32
    %12 = vector.broadcast %cst_7 : f32 to vector<8x256xf32>
    %13 = arith.divf %12, %11 : vector<8x256xf32>
    %14 = arith.mulf %6, %13 : vector<8x256xf32>
    %c0_8 = arith.constant 0 : index
    %c0_9 = arith.constant 0 : index
    %15 = vector.load %arg4[%c0_8, %c0_9] : memref<256x256xbf16, #tpu.memory_space<vmem>>, vector<256x256xbf16>
    %16 = arith.truncf %14 : vector<8x256xf32> to vector<8x256xbf16>
    %cst_10 = arith.constant dense<0.000000e+00> : vector<8x256xf32>
    %17 = tpu.matmul %16, %15, %cst_10 {dimension_numbers = #tpu.dot_dimension_numbers<[1], [0], [0], [1], [0, 0, 1, 1], [], []>} : vector<8x256xbf16>, vector<256x256xbf16>, vector<8x256xf32> -> vector<8x256xf32>
    %c0_11 = arith.constant 0 : index
    %c256 = arith.constant 256 : index
    %18 = vector.load %arg10[%c0_11, %c256] : memref<1x2560xf32, #tpu.memory_space<vmem>>, vector<1x256xf32>
    %19 = vector.broadcast %18 : vector<1x256xf32> to vector<8x256xf32>
    %20 = arith.addf %17, %19 : vector<8x256xf32>
    %c0_12 = arith.constant 0 : index
    %c0_13 = arith.constant 0 : index
    %21 = vector.load %arg5[%c0_12, %c0_13] : memref<256x128xbf16, #tpu.memory_space<vmem>>, vector<256x128xbf16>
    %22 = arith.truncf %20 : vector<8x256xf32> to vector<8x256xbf16>
    %cst_14 = arith.constant dense<0.000000e+00> : vector<8x128xf32>
    %23 = tpu.matmul %22, %21, %cst_14 {dimension_numbers = #tpu.dot_dimension_numbers<[1], [0], [0], [1], [0, 0, 1, 1], [], []>} : vector<8x256xbf16>, vector<256x128xbf16>, vector<8x128xf32> -> vector<8x128xf32>
    %c0_15 = arith.constant 0 : index
    %c0_16 = arith.constant 0 : index
    %24 = vector.load %arg2[%c0_15, %c0_16] : memref<8x32xf32, #tpu.memory_space<vmem>>, vector<8x32xf32>
    %c0_17 = arith.constant 0 : index
    %c0_18 = arith.constant 0 : index
    %25 = vector.load %arg6[%c0_17, %c0_18] : memref<32x128xbf16, #tpu.memory_space<vmem>>, vector<32x128xbf16>
    %26 = arith.truncf %24 : vector<8x32xf32> to vector<8x32xbf16>
    %cst_19 = arith.constant dense<0.000000e+00> : vector<8x128xf32>
    %27 = tpu.matmul %26, %25, %cst_19 {dimension_numbers = #tpu.dot_dimension_numbers<[1], [0], [0], [1], [0, 0, 1, 1], [], []>} : vector<8x32xbf16>, vector<32x128xbf16>, vector<8x128xf32> -> vector<8x128xf32>
    %28 = arith.addf %23, %27 : vector<8x128xf32>
    %c0_20 = arith.constant 0 : index
    %c512 = arith.constant 512 : index
    %29 = vector.load %arg10[%c0_20, %c512] : memref<1x2560xf32, #tpu.memory_space<vmem>>, vector<1x128xf32>
    %30 = vector.broadcast %29 : vector<1x128xf32> to vector<8x128xf32>
    %31 = arith.addf %28, %30 : vector<8x128xf32>
    %cst_21 = arith.constant dense<0.000000e+00> : vector<8xf32>
    %32 = vector.multi_reduction <add>, %31, %cst_21 [1] : vector<8x128xf32> to vector<8xf32>
    %33 = vector.shape_cast %32 : vector<8xf32> to vector<8x1xf32>
    %cst_22 = arith.constant 1.280000e+02 : f32
    %34 = vector.broadcast %cst_22 : f32 to vector<8x1xf32>
    %35 = arith.divf %33, %34 : vector<8x1xf32>
    %36 = vector.broadcast %35 : vector<8x1xf32> to vector<8x128xf32>
    %37 = arith.subf %31, %36 : vector<8x128xf32>
    %38 = arith.mulf %37, %37 : vector<8x128xf32>
    %cst_23 = arith.constant dense<0.000000e+00> : vector<8xf32>
    %39 = vector.multi_reduction <add>, %38, %cst_23 [1] : vector<8x128xf32> to vector<8xf32>
    %40 = vector.shape_cast %39 : vector<8xf32> to vector<8x1xf32>
    %cst_24 = arith.constant 1.280000e+02 : f32
    %41 = vector.broadcast %cst_24 : f32 to vector<8x1xf32>
    %42 = arith.divf %40, %41 : vector<8x1xf32>
    %43 = vector.broadcast %35 : vector<8x1xf32> to vector<8x128xf32>
    %44 = arith.subf %31, %43 : vector<8x128xf32>
    %cst_25 = arith.constant 9.99999974E-6 : f32
    %45 = vector.broadcast %cst_25 : f32 to vector<8x1xf32>
    %46 = arith.addf %42, %45 : vector<8x1xf32>
    %47 = math.rsqrt %46 : vector<8x1xf32>
    %48 = vector.broadcast %47 : vector<8x1xf32> to vector<8x128xf32>
    %49 = arith.mulf %44, %48 : vector<8x128xf32>
    %c0_26 = arith.constant 0 : index
    %c768 = arith.constant 768 : index
    %50 = vector.load %arg10[%c0_26, %c768] : memref<1x2560xf32, #tpu.memory_space<vmem>>, vector<1x128xf32>
    %51 = vector.broadcast %50 : vector<1x128xf32> to vector<8x128xf32>
    %52 = arith.mulf %49, %51 : vector<8x128xf32>
    %c0_27 = arith.constant 0 : index
    %c896 = arith.constant 896 : index
    %53 = vector.load %arg10[%c0_27, %c896] : memref<1x2560xf32, #tpu.memory_space<vmem>>, vector<1x128xf32>
    %54 = vector.broadcast %53 : vector<1x128xf32> to vector<8x128xf32>
    %55 = arith.addf %52, %54 : vector<8x128xf32>
    %c0_28 = arith.constant 0 : index
    %c0_29 = arith.constant 0 : index
    %c0_30 = arith.constant 0 : index
    %56 = vector.load %arg7[%c0_28, %c0_29, %c0_30] : memref<2x128x512xbf16, #tpu.memory_space<vmem>>, vector<1x128x512xbf16>
    %57 = vector.shape_cast %56 : vector<1x128x512xbf16> to vector<128x512xbf16>
    %58 = arith.truncf %55 : vector<8x128xf32> to vector<8x128xbf16>
    %cst_31 = arith.constant dense<0.000000e+00> : vector<8x512xf32>
    %59 = tpu.matmul %58, %57, %cst_31 {dimension_numbers = #tpu.dot_dimension_numbers<[1], [0], [0], [1], [0, 0, 1, 1], [], []>} : vector<8x128xbf16>, vector<128x512xbf16>, vector<8x512xf32> -> vector<8x512xf32>
    %c0_32 = arith.constant 0 : index
    %c1024 = arith.constant 1024 : index
    %60 = vector.load %arg10[%c0_32, %c1024] : memref<1x2560xf32, #tpu.memory_space<vmem>>, vector<1x512xf32>
    %61 = vector.broadcast %60 : vector<1x512xf32> to vector<8x512xf32>
    %62 = arith.addf %59, %61 : vector<8x512xf32>
    %cst_33 = arith.constant 0.000000e+00 : f32
    %63 = vector.broadcast %cst_33 : f32 to vector<8x512xf32>
    %64 = arith.maximumf %62, %63 : vector<8x512xf32>
    %c0_34 = arith.constant 0 : index
    %c0_35 = arith.constant 0 : index
    %c0_36 = arith.constant 0 : index
    %65 = vector.load %arg8[%c0_34, %c0_35, %c0_36] : memref<2x512x128xbf16, #tpu.memory_space<vmem>>, vector<1x512x128xbf16>
    %66 = vector.shape_cast %65 : vector<1x512x128xbf16> to vector<512x128xbf16>
    %67 = arith.truncf %64 : vector<8x512xf32> to vector<8x512xbf16>
    %cst_37 = arith.constant dense<0.000000e+00> : vector<8x128xf32>
    %68 = tpu.matmul %67, %66, %cst_37 {dimension_numbers = #tpu.dot_dimension_numbers<[1], [0], [0], [1], [0, 0, 1, 1], [], []>} : vector<8x512xbf16>, vector<512x128xbf16>, vector<8x128xf32> -> vector<8x128xf32>
    %69 = arith.addf %31, %68 : vector<8x128xf32>
    %c0_38 = arith.constant 0 : index
    %c1536 = arith.constant 1536 : index
    %70 = vector.load %arg10[%c0_38, %c1536] : memref<1x2560xf32, #tpu.memory_space<vmem>>, vector<1x128xf32>
    %71 = vector.broadcast %70 : vector<1x128xf32> to vector<8x128xf32>
    %72 = arith.addf %69, %71 : vector<8x128xf32>
    %cst_39 = arith.constant dense<0.000000e+00> : vector<8xf32>
    %73 = vector.multi_reduction <add>, %72, %cst_39 [1] : vector<8x128xf32> to vector<8xf32>
    %74 = vector.shape_cast %73 : vector<8xf32> to vector<8x1xf32>
    %cst_40 = arith.constant 1.280000e+02 : f32
    %75 = vector.broadcast %cst_40 : f32 to vector<8x1xf32>
    %76 = arith.divf %74, %75 : vector<8x1xf32>
    %77 = vector.broadcast %76 : vector<8x1xf32> to vector<8x128xf32>
    %78 = arith.subf %72, %77 : vector<8x128xf32>
    %79 = arith.mulf %78, %78 : vector<8x128xf32>
    %cst_41 = arith.constant dense<0.000000e+00> : vector<8xf32>
    %80 = vector.multi_reduction <add>, %79, %cst_41 [1] : vector<8x128xf32> to vector<8xf32>
    %81 = vector.shape_cast %80 : vector<8xf32> to vector<8x1xf32>
    %cst_42 = arith.constant 1.280000e+02 : f32
    %82 = vector.broadcast %cst_42 : f32 to vector<8x1xf32>
    %83 = arith.divf %81, %82 : vector<8x1xf32>
    %84 = vector.broadcast %76 : vector<8x1xf32> to vector<8x128xf32>
    %85 = arith.subf %72, %84 : vector<8x128xf32>
    %cst_43 = arith.constant 9.99999974E-6 : f32
    %86 = vector.broadcast %cst_43 : f32 to vector<8x1xf32>
    %87 = arith.addf %83, %86 : vector<8x1xf32>
    %88 = math.rsqrt %87 : vector<8x1xf32>
    %89 = vector.broadcast %88 : vector<8x1xf32> to vector<8x128xf32>
    %90 = arith.mulf %85, %89 : vector<8x128xf32>
    %c0_44 = arith.constant 0 : index
    %c1664 = arith.constant 1664 : index
    %91 = vector.load %arg10[%c0_44, %c1664] : memref<1x2560xf32, #tpu.memory_space<vmem>>, vector<1x128xf32>
    %92 = vector.broadcast %91 : vector<1x128xf32> to vector<8x128xf32>
    %93 = arith.mulf %90, %92 : vector<8x128xf32>
    %c0_45 = arith.constant 0 : index
    %c1792 = arith.constant 1792 : index
    %94 = vector.load %arg10[%c0_45, %c1792] : memref<1x2560xf32, #tpu.memory_space<vmem>>, vector<1x128xf32>
    %95 = vector.broadcast %94 : vector<1x128xf32> to vector<8x128xf32>
    %96 = arith.addf %93, %95 : vector<8x128xf32>
    %c1 = arith.constant 1 : index
    %c0_46 = arith.constant 0 : index
    %c0_47 = arith.constant 0 : index
    %97 = vector.load %arg7[%c1, %c0_46, %c0_47] : memref<2x128x512xbf16, #tpu.memory_space<vmem>>, vector<1x128x512xbf16>
    %98 = vector.shape_cast %97 : vector<1x128x512xbf16> to vector<128x512xbf16>
    %99 = arith.truncf %96 : vector<8x128xf32> to vector<8x128xbf16>
    %cst_48 = arith.constant dense<0.000000e+00> : vector<8x512xf32>
    %100 = tpu.matmul %99, %98, %cst_48 {dimension_numbers = #tpu.dot_dimension_numbers<[1], [0], [0], [1], [0, 0, 1, 1], [], []>} : vector<8x128xbf16>, vector<128x512xbf16>, vector<8x512xf32> -> vector<8x512xf32>
    %c0_49 = arith.constant 0 : index
    %c1920 = arith.constant 1920 : index
    %101 = vector.load %arg10[%c0_49, %c1920] : memref<1x2560xf32, #tpu.memory_space<vmem>>, vector<1x512xf32>
    %102 = vector.broadcast %101 : vector<1x512xf32> to vector<8x512xf32>
    %103 = arith.addf %100, %102 : vector<8x512xf32>
    %cst_50 = arith.constant 0.000000e+00 : f32
    %104 = vector.broadcast %cst_50 : f32 to vector<8x512xf32>
    %105 = arith.maximumf %103, %104 : vector<8x512xf32>
    %c1_51 = arith.constant 1 : index
    %c0_52 = arith.constant 0 : index
    %c0_53 = arith.constant 0 : index
    %106 = vector.load %arg8[%c1_51, %c0_52, %c0_53] : memref<2x512x128xbf16, #tpu.memory_space<vmem>>, vector<1x512x128xbf16>
    %107 = vector.shape_cast %106 : vector<1x512x128xbf16> to vector<512x128xbf16>
    %108 = arith.truncf %105 : vector<8x512xf32> to vector<8x512xbf16>
    %cst_54 = arith.constant dense<0.000000e+00> : vector<8x128xf32>
    %109 = tpu.matmul %108, %107, %cst_54 {dimension_numbers = #tpu.dot_dimension_numbers<[1], [0], [0], [1], [0, 0, 1, 1], [], []>} : vector<8x512xbf16>, vector<512x128xbf16>, vector<8x128xf32> -> vector<8x128xf32>
    %110 = arith.addf %72, %109 : vector<8x128xf32>
    %c0_55 = arith.constant 0 : index
    %c2432 = arith.constant 2432 : index
    %111 = vector.load %arg10[%c0_55, %c2432] : memref<1x2560xf32, #tpu.memory_space<vmem>>, vector<1x128xf32>
    %112 = vector.broadcast %111 : vector<1x128xf32> to vector<8x128xf32>
    %113 = arith.addf %110, %112 : vector<8x128xf32>
    %cst_56 = arith.constant dense<0.000000e+00> : vector<8xf32>
    %114 = vector.multi_reduction <add>, %113, %cst_56 [1] : vector<8x128xf32> to vector<8xf32>
    %115 = vector.shape_cast %114 : vector<8xf32> to vector<8x1xf32>
    %cst_57 = arith.constant 1.280000e+02 : f32
    %116 = vector.broadcast %cst_57 : f32 to vector<8x1xf32>
    %117 = arith.divf %115, %116 : vector<8x1xf32>
    %118 = vector.broadcast %117 : vector<8x1xf32> to vector<8x128xf32>
    %119 = arith.subf %113, %118 : vector<8x128xf32>
    %120 = arith.mulf %119, %119 : vector<8x128xf32>
    %cst_58 = arith.constant dense<0.000000e+00> : vector<8xf32>
    %121 = vector.multi_reduction <add>, %120, %cst_58 [1] : vector<8x128xf32> to vector<8xf32>
    %122 = vector.shape_cast %121 : vector<8xf32> to vector<8x1xf32>
    %cst_59 = arith.constant 1.280000e+02 : f32
    %123 = vector.broadcast %cst_59 : f32 to vector<8x1xf32>
    %124 = arith.divf %122, %123 : vector<8x1xf32>
    %125 = vector.broadcast %117 : vector<8x1xf32> to vector<8x128xf32>
    %126 = arith.subf %113, %125 : vector<8x128xf32>
    %cst_60 = arith.constant 9.99999974E-6 : f32
    %127 = vector.broadcast %cst_60 : f32 to vector<8x1xf32>
    %128 = arith.addf %124, %127 : vector<8x1xf32>
    %129 = math.rsqrt %128 : vector<8x1xf32>
    %130 = vector.broadcast %129 : vector<8x1xf32> to vector<8x128xf32>
    %131 = arith.mulf %126, %130 : vector<8x128xf32>
    %c0_61 = arith.constant 0 : index
    %c0_62 = arith.constant 0 : index
    %132 = vector.load %arg11[%c0_61, %c0_62] : memref<8x128xf32, #tpu.memory_space<vmem>>, vector<8x128xf32>
    tpu.vector_store %arg11[%c0_61, %c0_62], %131 {strides = array<i32>} : memref<8x128xf32, #tpu.memory_space<vmem>>, vector<8x128xf32>,
    %c0_63 = arith.constant 0 : index
    %c0_64 = arith.constant 0 : index
    %133 = vector.load %arg9[%c0_63, %c0_64] : memref<128x128xbf16, #tpu.memory_space<vmem>>, vector<128x128xbf16>
    %134 = arith.truncf %131 : vector<8x128xf32> to vector<8x128xbf16>
    %cst_65 = arith.constant dense<0.000000e+00> : vector<8x128xf32>
    %135 = tpu.matmul %134, %133, %cst_65 {dimension_numbers = #tpu.dot_dimension_numbers<[1], [0], [0], [1], [0, 0, 1, 1], [], []>} : vector<8x128xbf16>, vector<128x128xbf16>, vector<8x128xf32> -> vector<8x128xf32>
    %c0_66 = arith.constant 0 : index
    %c640 = arith.constant 640 : index
    %136 = vector.load %arg10[%c0_66, %c640] : memref<1x2560xf32, #tpu.memory_space<vmem>>, vector<1x128xf32>
    %137 = vector.broadcast %136 : vector<1x128xf32> to vector<8x128xf32>
    %138 = arith.addf %135, %137 : vector<8x128xf32>
    %c0_67 = arith.constant 0 : index
    %c0_68 = arith.constant 0 : index
    %139 = vector.load %arg12[%c0_67, %c0_68] : memref<8x128xf32, #tpu.memory_space<vmem>>, vector<8x128xf32>
    tpu.vector_store %arg12[%c0_67, %c0_68], %138 {strides = array<i32>} : memref<8x128xf32, #tpu.memory_space<vmem>>, vector<8x128xf32>,
    return
  }
  func.func @transform_0(%arg0: i32) -> (i32, i32) {
    %c0_i32 = arith.constant 0 : i32
    %c0_i32_0 = arith.constant 0 : i32
    return %arg0, %c0_i32 : i32, i32
  }
  func.func @transform_1(%arg0: i32) -> (i32, i32) {
    %c0_i32 = arith.constant 0 : i32
    %c0_i32_0 = arith.constant 0 : i32
    return %arg0, %c0_i32 : i32, i32
  }
  func.func @transform_2(%arg0: i32) -> (i32, i32) {
    %c0_i32 = arith.constant 0 : i32
    %c0_i32_0 = arith.constant 0 : i32
    %c0_i32_1 = arith.constant 0 : i32
    return %c0_i32, %c0_i32_0 : i32, i32
  }
  func.func @transform_3(%arg0: i32) -> (i32, i32) {
    %c0_i32 = arith.constant 0 : i32
    %c0_i32_0 = arith.constant 0 : i32
    %c0_i32_1 = arith.constant 0 : i32
    return %c0_i32, %c0_i32_0 : i32, i32
  }
  func.func @transform_4(%arg0: i32) -> (i32, i32) {
    %c0_i32 = arith.constant 0 : i32
    %c0_i32_0 = arith.constant 0 : i32
    %c0_i32_1 = arith.constant 0 : i32
    return %c0_i32, %c0_i32_0 : i32, i32
  }
  func.func @transform_5(%arg0: i32) -> (i32, i32) {
    %c0_i32 = arith.constant 0 : i32
    %c0_i32_0 = arith.constant 0 : i32
    %c0_i32_1 = arith.constant 0 : i32
    return %c0_i32, %c0_i32_0 : i32, i32
  }
  func.func @transform_6(%arg0: i32) -> (i32, i32, i32) {
    %c0_i32 = arith.constant 0 : i32
    %c0_i32_0 = arith.constant 0 : i32
    %c0_i32_1 = arith.constant 0 : i32
    %c0_i32_2 = arith.constant 0 : i32
    return %c0_i32, %c0_i32_0, %c0_i32_1 : i32, i32, i32
  }
  func.func @transform_7(%arg0: i32) -> (i32, i32, i32) {
    %c0_i32 = arith.constant 0 : i32
    %c0_i32_0 = arith.constant 0 : i32
    %c0_i32_1 = arith.constant 0 : i32
    %c0_i32_2 = arith.constant 0 : i32
    return %c0_i32, %c0_i32_0, %c0_i32_1 : i32, i32, i32
  }
  func.func @transform_8(%arg0: i32) -> (i32, i32) {
    %c0_i32 = arith.constant 0 : i32
    %c0_i32_0 = arith.constant 0 : i32
    %c0_i32_1 = arith.constant 0 : i32
    return %c0_i32, %c0_i32_0 : i32, i32
  }
  func.func @transform_9(%arg0: i32) -> (i32, i32) {
    %c0_i32 = arith.constant 0 : i32
    %c0_i32_0 = arith.constant 0 : i32
    %c0_i32_1 = arith.constant 0 : i32
    return %c0_i32, %c0_i32_0 : i32, i32
  }
  func.func @transform_10(%arg0: i32) -> (i32, i32) {
    %c0_i32 = arith.constant 0 : i32
    %c0_i32_0 = arith.constant 0 : i32
    return %arg0, %c0_i32 : i32, i32
  }
  func.func @transform_11(%arg0: i32) -> (i32, i32) {
    %c0_i32 = arith.constant 0 : i32
    %c0_i32_0 = arith.constant 0 : i32
    return %arg0, %c0_i32 : i32, i32
  }
}

</mosaic_0001>

<llo_original>
// kernel: diffusion_policy_forward.1
$region0: #{diffusion_policy_forward.1}
  #allocation0 [shape = 'u32[]', space=smem, size = 0x4, offset = 0x4, fixed_abs, tag = 'smem constant byte address 0x4 - core index']
  #allocation1 [shape = 'u32[144,128]{1,0:T(1,128)}', space=vmem, size = 0x12000, scoped, tag = 'internal scratch']
  %s0 = inlined_call_operand.vmem [shape: f32[8,256], index: 0, kind: input, shape index: {}]
  %s1 = inlined_call_operand.vmem [shape: f32[8,32], index: 1, kind: input, shape index: {}]
  %s2 = inlined_call_operand.hbm [shape: bf16[256,256], index: 2, kind: input, shape index: {}]
  %s3 = inlined_call_operand.hbm [shape: bf16[256,256], index: 3, kind: input, shape index: {}]
  %s4 = inlined_call_operand.hbm [shape: bf16[256,128], index: 4, kind: input, shape index: {}]
  %s5 = inlined_call_operand.vmem [shape: bf16[32,128], index: 5, kind: input, shape index: {}]
  %s6 = inlined_call_operand.hbm [shape: bf16[2,128,512], index: 6, kind: input, shape index: {}]
  %s7 = inlined_call_operand.hbm [shape: bf16[2,512,128], index: 7, kind: input, shape index: {}]
  %s8 = inlined_call_operand.vmem [shape: bf16[128,128], index: 8, kind: input, shape index: {}]
  %s9 = inlined_call_operand.vmem [shape: f32[1,2560], index: 9, kind: input, shape index: {}]
  %s10 = inlined_call_operand.hbm [shape: f32[8,128], index: 10, kind: output, shape index: {0}]
  %s11 = inlined_call_operand.hbm [shape: f32[8,128], index: 11, kind: output, shape index: {1}]
  %12 = xla_tuple %s10, %s11
  %s13 = sld [smem:[#allocation0]]
  $region78: #{diffusion_policy_forward.1} parent=0
    _
  %s15 = ssub.s32 1, %s13
  %s16 = scalar_select 0, %s15, %s13
  $region1: #{diffusion_policy_forward.1} parent=0
    #allocation2 [shape = 'u8[131072]{0}', space=vmem, size = 0x20000, scoped, tag = 'input window, operand 2, single buffered']
    #allocation3 [shape = 's32[1]{0}', space=sflag, size = 0x4, scoped, tag = 'scoped memory for diffusion_policy_forward.1']
    #allocation4 [shape = 's32[1]{0}', space=sflag, size = 0x4, scoped, tag = 'scoped memory for diffusion_policy_forward.1']
    #allocation5 [shape = 'u8[131072]{0}', space=vmem, size = 0x20000, scoped, tag = 'input window, operand 3, single buffered']
    #allocation6 [shape = 's32[1]{0}', space=sflag, size = 0x4, scoped, tag = 'scoped memory for diffusion_policy_forward.1']
    #allocation7 [shape = 'u8[65536]{0}', space=vmem, size = 0x10000, scoped, tag = 'input window, operand 4, single buffered']
    #allocation8 [shape = 'u8[262144]{0}', space=vmem, size = 0x40000, scoped, tag = 'input window, operand 6, single buffered']
    #allocation9 [shape = 's32[1]{0}', space=sflag, size = 0x4, scoped, tag = 'scoped memory for diffusion_policy_forward.1']
    #allocation10 [shape = 'u8[262144]{0}', space=vmem, size = 0x40000, scoped, tag = 'input window, operand 7, single buffered']
    #allocation11 [shape = 'u8[4096]{0}', space=vmem, size = 0x1000, scoped, tag = 'output window, operand 0, single buffered']
    #allocation12 [shape = 'u8[4096]{0}', space=vmem, size = 0x1000, scoped, tag = 'output window, operand 1, single buffered']
    #allocation13 [shape = 's32[1]{0}', space=sflag, size = 0x4, scoped, tag = 'scoped memory for diffusion_policy_forward.1']
    %17 = vsyncpa [#allocation3], 0
    %18 = vsyncpa [#allocation6], 0
    %19 = vsyncpa [#allocation9], 0
    %20 = vsyncpa [#allocation4], 0
    %21 = vsyncpa [#allocation13], 0
    // Predicated region
    $region2: #{diffusion_policy_forward.1} parent=1 // pred_check
      _
    $region3: #{diffusion_policy_forward.1} parent=1 // pred_check_branch
      %23 = sbr.rel (0) target = $region5
    $region4: #{diffusion_policy_forward.1} parent=1 // pred_region
      _
    $region5: #{diffusion_policy_forward.1} parent=1 // pred_fallthru
      _
    // Predicated region
    $region6: #{diffusion_policy_forward.1} parent=1 // pred_check
      _
    $region7: #{diffusion_policy_forward.1} parent=1 // pred_check_branch
      %25 = sbr.rel (0) target = $region9
    $region8: #{diffusion_policy_forward.1} parent=1 // pred_region
      _
    $region9: #{diffusion_policy_forward.1} parent=1 // pred_fallthru
      _
    // Predicated region
    $region10: #{diffusion_policy_forward.1} parent=1 // pred_check
      _
    $region11: #{diffusion_policy_forward.1} parent=1 // pred_check_branch
      %27 = sbr.rel (0) target = $region13
    $region12: #{diffusion_policy_forward.1} parent=1 // pred_region
      %s29 = ssub.s32 4096, 4096
      %30 = vsyncadd [#allocation3], %s29
      %s31 = sshll.u32 [#allocation2], 4
      %s32 = int_to_ptr.vmem [resolvable:$true] %s31
      %37 = dma.hbm_to_vmem [thread:$0]  %s2, 4096, %s32, [#allocation3], 128, 128, 8
    $region13: #{diffusion_policy_forward.1} parent=1 // pred_fallthru
      _
    // Predicated region
    $region14: #{diffusion_policy_forward.1} parent=1 // pred_check
      _
    $region15: #{diffusion_policy_forward.1} parent=1 // pred_check_branch
      %39 = sbr.rel (0) target = $region17
    $region16: #{diffusion_policy_forward.1} parent=1 // pred_region
      %s41 = ssub.s32 4096, 4096
      %42 = vsyncadd [#allocation6], %s41
      %s43 = sshll.u32 [#allocation5], 4
      %s44 = int_to_ptr.vmem [resolvable:$true] %s43
      %49 = dma.hbm_to_vmem [thread:$0]  %s3, 4096, %s44, [#allocation6], 128, 128, 8
    $region17: #{diffusion_policy_forward.1} parent=1 // pred_fallthru
      _
    // Predicated region
    $region18: #{diffusion_policy_forward.1} parent=1 // pred_check
      _
    $region19: #{diffusion_policy_forward.1} parent=1 // pred_check_branch
      %51 = sbr.rel (0) target = $region21
    $region20: #{diffusion_policy_forward.1} parent=1 // pred_region
      %s53 = ssub.s32 2048, 2048
      %54 = vsyncadd [#allocation6], %s53
      %s55 = sshll.u32 [#allocation7], 4
      %s56 = int_to_ptr.vmem [resolvable:$true] %s55
      %61 = dma.hbm_to_vmem [thread:$0]  %s4, 2048, %s56, [#allocation6], 64, 64, 4
    $region21: #{diffusion_policy_forward.1} parent=1 // pred_fallthru
      _
    // Predicated region
    $region22: #{diffusion_policy_forward.1} parent=1 // pred_check
      _
    $region23: #{diffusion_policy_forward.1} parent=1 // pred_check_branch
      %63 = sbr.rel (0) target = $region25
    $region24: #{diffusion_policy_forward.1} parent=1 // pred_region
      _
    $region25: #{diffusion_policy_forward.1} parent=1 // pred_fallthru
      _
    // Predicated region
    $region26: #{diffusion_policy_forward.1} parent=1 // pred_check
      _
    $region27: #{diffusion_policy_forward.1} parent=1 // pred_check_branch
      %65 = sbr.rel (0) target = $region29
    $region28: #{diffusion_policy_forward.1} parent=1 // pred_region
      %s67 = ssub.s32 8192, 8192
      %68 = vsyncadd [#allocation9], %s67
      %s69 = sshll.u32 [#allocation8], 4
      %s70 = int_to_ptr.vmem [resolvable:$true] %s69
      %75 = dma.hbm_to_vmem [thread:$0]  %s6, 8192, %s70, [#allocation9], 256, 256, 16
    $region29: #{diffusion_policy_forward.1} parent=1 // pred_fallthru
      _
    // Predicated region
    $region30: #{diffusion_policy_forward.1} parent=1 // pred_check
      _
    $region31: #{diffusion_policy_forward.1} parent=1 // pred_check_branch
      %77 = sbr.rel (0) target = $region33
    $region32: #{diffusion_policy_forward.1} parent=1 // pred_region
      %s79 = ssub.s32 8192, 8192
      %80 = vsyncadd [#allocation9], %s79
      %s81 = sshll.u32 [#allocation10], 4
      %s82 = int_to_ptr.vmem [resolvable:$true] %s81
      %87 = dma.hbm_to_vmem [thread:$0]  %s7, 8192, %s82, [#allocation9], 64, 64, 4
    $region33: #{diffusion_policy_forward.1} parent=1 // pred_fallthru
      _
    // Predicated region
    $region34: #{diffusion_policy_forward.1} parent=1 // pred_check
      _
    $region35: #{diffusion_policy_forward.1} parent=1 // pred_check_branch
      %89 = sbr.rel (0) target = $region37
    $region36: #{diffusion_policy_forward.1} parent=1 // pred_region
      _
    $region37: #{diffusion_policy_forward.1} parent=1 // pred_fallthru
      _
    // Predicated region
    $region38: #{diffusion_policy_forward.1} parent=1 // pred_check
      _
    $region39: #{diffusion_policy_forward.1} parent=1 // pred_check_branch
      %91 = sbr.rel (0) target = $region41
    $region40: #{diffusion_policy_forward.1} parent=1 // pred_region
      _
    $region41: #{diffusion_policy_forward.1} parent=1 // pred_fallthru
      _
    // Predicated region
    $region42: #{diffusion_policy_forward.1} parent=1 // pred_check
      _
    $region43: #{diffusion_policy_forward.1} parent=1 // pred_check_branch
      %93 = sbr.rel (0) target = $region45
    $region44: #{diffusion_policy_forward.1} parent=1 // pred_region
      %94 = dma.done [#allocation3], 4096
    $region45: #{diffusion_policy_forward.1} parent=1 // pred_fallthru
      _
    // Predicated region
    $region46: #{diffusion_policy_forward.1} parent=1 // pred_check
      _
    $region47: #{diffusion_policy_forward.1} parent=1 // pred_check_branch
      %96 = sbr.rel (0) target = $region49
    $region48: #{diffusion_policy_forward.1} parent=1 // pred_region
      %97 = dma.done [#allocation6], 4096
    $region49: #{diffusion_policy_forward.1} parent=1 // pred_fallthru
      _
    // Predicated region
    $region50: #{diffusion_policy_forward.1} parent=1 // pred_check
      _
    $region51: #{diffusion_policy_forward.1} parent=1 // pred_check_branch
      %99 = sbr.rel (0) target = $region53
    $region52: #{diffusion_policy_forward.1} parent=1 // pred_region
      %100 = dma.done [#allocation6], 2048
    $region53: #{diffusion_policy_forward.1} parent=1 // pred_fallthru
      _
    // Predicated region
    $region54: #{diffusion_policy_forward.1} parent=1 // pred_check
      _
    $region55: #{diffusion_policy_forward.1} parent=1 // pred_check_branch
      %102 = sbr.rel (0) target = $region57
    $region56: #{diffusion_policy_forward.1} parent=1 // pred_region
      %103 = dma.done [#allocation9], 8192
    $region57: #{diffusion_policy_forward.1} parent=1 // pred_fallthru
      _
    // Predicated region
    $region58: #{diffusion_policy_forward.1} parent=1 // pred_check
      _
    $region59: #{diffusion_policy_forward.1} parent=1 // pred_check_branch
      %105 = sbr.rel (0) target = $region61
    $region60: #{diffusion_policy_forward.1} parent=1 // pred_region
      %106 = dma.done [#allocation9], 8192
    $region61: #{diffusion_policy_forward.1} parent=1 // pred_fallthru
      _
    %v108 = vld [vmem:[%s0] sm:$0xff]
    %v109 = vld [vmem:[%s0 + $0x8] sm:$0xff]
    %v110 = vld [vmem:[#allocation2] sm:$0xff]
    %v111 = vld [vmem:[#allocation2 + $0x8] sm:$0xff]
    %v112 = vld [vmem:[#allocation2 + $0x10] sm:$0xff]
    %v113 = vld [vmem:[#allocation2 + $0x18] sm:$0xff]
    %v114 = vld [vmem:[#allocation2 + $0x20] sm:$0xff]
    %v115 = vld [vmem:[#allocation2 + $0x28] sm:$0xff]
    %v116 = vld [vmem:[#allocation2 + $0x30] sm:$0xff]
    %v117 = vld [vmem:[#allocation2 + $0x38] sm:$0xff]
    %v118 = vld [vmem:[#allocation2 + $0x40] sm:$0xff]
    %v119 = vld [vmem:[#allocation2 + $0x48] sm:$0xff]
    %v120 = vld [vmem:[#allocation2 + $0x50] sm:$0xff]
    %v121 = vld [vmem:[#allocation2 + $0x58] sm:$0xff]
    %v122 = vld [vmem:[#allocation2 + $0x60] sm:$0xff]
    %v123 = vld [vmem:[#allocation2 + $0x68] sm:$0xff]
    %v124 = vld [vmem:[#allocation2 + $0x70] sm:$0xff]
    %v125 = vld [vmem:[#allocation2 + $0x78] sm:$0xff]
    %v126 = vld [vmem:[#allocation2 + $0x80] sm:$0xff]
    %v127 = vld [vmem:[#allocation2 + $0x88] sm:$0xff]
    %v128 = vld [vmem:[#allocation2 + $0x90] sm:$0xff]
    %v129 = vld [vmem:[#allocation2 + $0x98] sm:$0xff]
    %v130 = vld [vmem:[#allocation2 + $0xa0] sm:$0xff]
    %v131 = vld [vmem:[#allocation2 + $0xa8] sm:$0xff]
    %v132 = vld [vmem:[#allocation2 + $0xb0] sm:$0xff]
    %v133 = vld [vmem:[#allocation2 + $0xb8] sm:$0xff]
    %v134 = vld [vmem:[#allocation2 + $0xc0] sm:$0xff]
    %v135 = vld [vmem:[#allocation2 + $0xc8] sm:$0xff]
    %v136 = vld [vmem:[#allocation2 + $0xd0] sm:$0xff]
    %v137 = vld [vmem:[#allocation2 + $0xd8] sm:$0xff]
    %v138 = vld [vmem:[#allocation2 + $0xe0] sm:$0xff]
    %v139 = vld [vmem:[#allocation2 + $0xe8] sm:$0xff]
    %v140 = vld [vmem:[#allocation2 + $0xf0] sm:$0xff]
    %v141 = vld [vmem:[#allocation2 + $0xf8] sm:$0xff]
    %v142 = vpack.c.bf16 %v108, %v108
    %v143 = vpack.c.bf16 %v109, %v109
    %v144 = vld [vmem:[%s9] sm:$0x3]
    %v146 = vlaneseq
    %v147 = vshrl.u32 %v146, 7
    %v148 = vsub.s32 0, %v147
    %v149 = vrot.slane %v144, %v148
    %v150 = vlaneseq
    %v151 = vshrl.u32 %v150, 7
    %v152 = vsub.s32 1, %v151
    %v153 = vrot.slane %v144, %v152
    %v188 = vunpack.c.l.b16 %v110
    %v189 = vunpack.c.h.b16 %v110
    %v190 = vunpack.c.l.b16 %v111
    %v191 = vunpack.c.h.b16 %v111
    %v192 = vunpack.c.l.b16 %v112
    %v193 = vunpack.c.h.b16 %v112
    %v194 = vunpack.c.l.b16 %v113
    %v195 = vunpack.c.h.b16 %v113
    %v196 = vunpack.c.l.b16 %v114
    %v197 = vunpack.c.h.b16 %v114
    %v198 = vunpack.c.l.b16 %v115
    %v199 = vunpack.c.h.b16 %v115
    %v200 = vunpack.c.l.b16 %v116
    %v201 = vunpack.c.h.b16 %v116
    %v202 = vunpack.c.l.b16 %v117
    %v203 = vunpack.c.h.b16 %v117
    %v204 = vunpack.c.l.b16 %v118
    %v205 = vunpack.c.h.b16 %v118
    %v206 = vunpack.c.l.b16 %v119
    %v207 = vunpack.c.h.b16 %v119
    %v208 = vunpack.c.l.b16 %v120
    %v209 = vunpack.c.h.b16 %v120
    %v210 = vunpack.c.l.b16 %v121
    %v211 = vunpack.c.h.b16 %v121
    %v212 = vunpack.c.l.b16 %v122
    %v213 = vunpack.c.h.b16 %v122
    %v214 = vunpack.c.l.b16 %v123
    %v215 = vunpack.c.h.b16 %v123
    %v216 = vunpack.c.l.b16 %v124
    %v217 = vunpack.c.h.b16 %v124
    %v218 = vunpack.c.l.b16 %v125
    %v219 = vunpack.c.h.b16 %v125
    %v220 = vunpack.c.l.b16 %v126
    %v221 = vunpack.c.h.b16 %v126
    %v222 = vunpack.c.l.b16 %v127
    %v223 = vunpack.c.h.b16 %v127
    %v224 = vunpack.c.l.b16 %v128
    %v225 = vunpack.c.h.b16 %v128
    %v226 = vunpack.c.l.b16 %v129
    %v227 = vunpack.c.h.b16 %v129
    %v228 = vunpack.c.l.b16 %v130
    %v229 = vunpack.c.h.b16 %v130
    %v230 = vunpack.c.l.b16 %v131
    %v231 = vunpack.c.h.b16 %v131
    %v232 = vunpack.c.l.b16 %v132
    %v233 = vunpack.c.h.b16 %v132
    %v234 = vunpack.c.l.b16 %v133
    %v235 = vunpack.c.h.b16 %v133
    %v236 = vunpack.c.l.b16 %v134
    %v237 = vunpack.c.h.b16 %v134
    %v238 = vunpack.c.l.b16 %v135
    %v239 = vunpack.c.h.b16 %v135
    %v240 = vunpack.c.l.b16 %v136
    %v241 = vunpack.c.h.b16 %v136
    %v242 = vunpack.c.l.b16 %v137
    %v243 = vunpack.c.h.b16 %v137
    %v244 = vunpack.c.l.b16 %v138
    %v245 = vunpack.c.h.b16 %v138
    %v246 = vunpack.c.l.b16 %v139
    %v247 = vunpack.c.h.b16 %v139
    %v248 = vunpack.c.l.b16 %v140
    %v249 = vunpack.c.h.b16 %v140
    %v250 = vunpack.c.l.b16 %v141
    %v251 = vunpack.c.h.b16 %v141
    %v252 = vpack.c.b16 %v190, %v188
    %v253 = vpack.c.b16 %v191, %v189
    %v254 = vpack.c.b16 %v194, %v192
    %v255 = vpack.c.b16 %v195, %v193
    %v256 = vpack.c.b16 %v198, %v196
    %v257 = vpack.c.b16 %v199, %v197
    %v258 = vpack.c.b16 %v202, %v200
    %v259 = vpack.c.b16 %v203, %v201
    %v260 = vpack.c.b16 %v206, %v204
    %v261 = vpack.c.b16 %v207, %v205
    %v262 = vpack.c.b16 %v210, %v208
    %v263 = vpack.c.b16 %v211, %v209
    %v264 = vpack.c.b16 %v214, %v212
    %v265 = vpack.c.b16 %v215, %v213
    %v266 = vpack.c.b16 %v218, %v216
    %v267 = vpack.c.b16 %v219, %v217
    %v268 = vpack.c.b16 %v222, %v220
    %v269 = vpack.c.b16 %v223, %v221
    %v270 = vpack.c.b16 %v226, %v224
    %v271 = vpack.c.b16 %v227, %v225
    %v272 = vpack.c.b16 %v230, %v228
    %v273 = vpack.c.b16 %v231, %v229
    %v274 = vpack.c.b16 %v234, %v232
    %v275 = vpack.c.b16 %v235, %v233
    %v276 = vpack.c.b16 %v238, %v236
    %v277 = vpack.c.b16 %v239, %v237
    %v278 = vpack.c.b16 %v242, %v240
    %v279 = vpack.c.b16 %v243, %v241
    %v280 = vpack.c.b16 %v246, %v244
    %v281 = vpack.c.b16 %v247, %v245
    %v282 = vpack.c.b16 %v250, %v248
    %v283 = vpack.c.b16 %v251, %v249
    %316 = vmatprep.subr.bf16.mxu0 %v253
    %317 = vmatpush1.bf16.msra.mxu0 %v252
    %318 = vmatprep.subr.bf16.mxu0 %v255
    %319 = vmatpush1.bf16.msra.mxu0 %v254
    %320 = vmatprep.subr.bf16.mxu0 %v257
    %321 = vmatpush1.bf16.msra.mxu0 %v256
    %322 = vmatprep.subr.bf16.mxu0 %v259
    %323 = vmatpush1.bf16.msra.mxu0 %v258
    %324 = vmatprep.subr.bf16.mxu0 %v261
    %325 = vmatpush1.bf16.msra.mxu0 %v260
    %326 = vmatprep.subr.bf16.mxu0 %v263
    %327 = vmatpush1.bf16.msra.mxu0 %v262
    %328 = vmatprep.subr.bf16.mxu0 %v265
    %329 = vmatpush1.bf16.msra.mxu0 %v264
    %330 = vmatprep.subr.bf16.mxu0 %v267
    %331 = vmatpush1.bf16.msra.mxu0 %v266
    %332 = vmatprep.subr.bf16.mxu0 %v269
    %333 = vmatpush1.bf16.msra.mxu0 %v268
    %334 = vmatprep.subr.bf16.mxu0 %v271
    %335 = vmatpush1.bf16.msra.mxu0 %v270
    %336 = vmatprep.subr.bf16.mxu0 %v273
    %337 = vmatpush1.bf16.msra.mxu0 %v272
    %338 = vmatprep.subr.bf16.mxu0 %v275
    %339 = vmatpush1.bf16.msra.mxu0 %v274
    %340 = vmatprep.subr.bf16.mxu0 %v277
    %341 = vmatpush1.bf16.msra.mxu0 %v276
    %342 = vmatprep.subr.bf16.mxu0 %v279
    %343 = vmatpush1.bf16.msra.mxu0 %v278
    %344 = vmatprep.subr.bf16.mxu0 %v281
    %345 = vmatpush1.bf16.msra.mxu0 %v280
    %346 = vmatprep.subr.bf16.mxu0 %v283
    %347 = vmatpush1.bf16.msra.mxu0 %v282
    %348 = vmatprep.mubr.bf16.mxu0 %v143
    %349 = vmatmul.mubr.bf16.gmra.mrb[0].mxu0 %v142
    %v350 = vpop.f32.mrb[0].mxu0
    %v351 = vadd.f32 %v149, %v350
    %v352 = vpop.f32.mrb[0].mxu0
    %v353 = vadd.f32 %v153, %v352
    %v354 = vpop.f32.mrb[0].mxu0
    %v355 = vpop.f32.mrb[0].mxu0
    %356 = vdwg.mxu0
    %v357 = vsub.f32 0.0, %v351
    %v358 = vsub.f32 0.0, %v353
    %v359 = vmul.f32 %v357, 1.442695
    %v360 = vpow.pop %v359
    %v361 = vmul.f32 %v358, 1.442695
    %v362 = vpow.pop %v361
    %v363 = vadd.f32 %v360, 1.0
    %v364 = vadd.f32 %v362, 1.0
    %v365 = vrcp.pop %v363
    %v366 = vmul.f32 1.0, %v365
    %v367 = vrcp.pop %v364
    %v368 = vmul.f32 1.0, %v367
    %v369 = vmul.f32 %v351, %v366
    %v370 = vmul.f32 %v353, %v368
    %v371 = vld [vmem:[#allocation5] sm:$0xff]
    %v372 = vld [vmem:[#allocation5 + $0x8] sm:$0xff]
    %v373 = vld [vmem:[#allocation5 + $0x10] sm:$0xff]
    %v374 = vld [vmem:[#allocation5 + $0x18] sm:$0xff]
    %v375 = vld [vmem:[#allocation5 + $0x20] sm:$0xff]
    %v376 = vld [vmem:[#allocation5 + $0x28] sm:$0xff]
    %v377 = vld [vmem:[#allocation5 + $0x30] sm:$0xff]
    %v378 = vld [vmem:[#allocation5 + $0x38] sm:$0xff]
    %v379 = vld [vmem:[#allocation5 + $0x40] sm:$0xff]
    %v380 = vld [vmem:[#allocation5 + $0x48] sm:$0xff]
    %v381 = vld [vmem:[#allocation5 + $0x50] sm:$0xff]
    %v382 = vld [vmem:[#allocation5 + $0x58] sm:$0xff]
    %v383 = vld [vmem:[#allocation5 + $0x60] sm:$0xff]
    %v384 = vld [vmem:[#allocation5 + $0x68] sm:$0xff]
    %v385 = vld [vmem:[#allocation5 + $0x70] sm:$0xff]
    %v386 = vld [vmem:[#allocation5 + $0x78] sm:$0xff]
    %v387 = vld [vmem:[#allocation5 + $0x80] sm:$0xff]
    %v388 = vld [vmem:[#allocation5 + $0x88] sm:$0xff]
    %v389 = vld [vmem:[#allocation5 + $0x90] sm:$0xff]
    %v390 = vld [vmem:[#allocation5 + $0x98] sm:$0xff]
    %v391 = vld [vmem:[#allocation5 + $0xa0] sm:$0xff]
    %v392 = vld [vmem:[#allocation5 + $0xa8] sm:$0xff]
    %v393 = vld [vmem:[#allocation5 + $0xb0] sm:$0xff]
    %v394 = vld [vmem:[#allocation5 + $0xb8] sm:$0xff]
    %v395 = vld [vmem:[#allocation5 + $0xc0] sm:$0xff]
    %v396 = vld [vmem:[#allocation5 + $0xc8] sm:$0xff]
    %v397 = vld [vmem:[#allocation5 + $0xd0] sm:$0xff]
    %v398 = vld [vmem:[#allocation5 + $0xd8] sm:$0xff]
    %v399 = vld [vmem:[#allocation5 + $0xe0] sm:$0xff]
    %v400 = vld [vmem:[#allocation5 + $0xe8] sm:$0xff]
    %v401 = vld [vmem:[#allocation5 + $0xf0] sm:$0xff]
    %v402 = vld [vmem:[#allocation5 + $0xf8] sm:$0xff]
    %v403 = vpack.c.bf16 %v369, %v369
    %v404 = vpack.c.bf16 %v370, %v370
    %v405 = vld [vmem:[%s9 + $0x2] sm:$0x3]
    %v407 = vlaneseq
    %v408 = vshrl.u32 %v407, 7
    %v409 = vsub.s32 0, %v408
    %v410 = vrot.slane %v405, %v409
    %v411 = vlaneseq
    %v412 = vshrl.u32 %v411, 7
    %v413 = vsub.s32 1, %v412
    %v414 = vrot.slane %v405, %v413
    %v449 = vunpack.c.l.b16 %v371
    %v450 = vunpack.c.h.b16 %v371
    %v451 = vunpack.c.l.b16 %v372
    %v452 = vunpack.c.h.b16 %v372
    %v453 = vunpack.c.l.b16 %v373
    %v454 = vunpack.c.h.b16 %v373
    %v455 = vunpack.c.l.b16 %v374
    %v456 = vunpack.c.h.b16 %v374
    %v457 = vunpack.c.l.b16 %v375
    %v458 = vunpack.c.h.b16 %v375
    %v459 = vunpack.c.l.b16 %v376
    %v460 = vunpack.c.h.b16 %v376
    %v461 = vunpack.c.l.b16 %v377
    %v462 = vunpack.c.h.b16 %v377
    %v463 = vunpack.c.l.b16 %v378
    %v464 = vunpack.c.h.b16 %v378
    %v465 = vunpack.c.l.b16 %v379
    %v466 = vunpack.c.h.b16 %v379
    %v467 = vunpack.c.l.b16 %v380
    %v468 = vunpack.c.h.b16 %v380
    %v469 = vunpack.c.l.b16 %v381
    %v470 = vunpack.c.h.b16 %v381
    %v471 = vunpack.c.l.b16 %v382
    %v472 = vunpack.c.h.b16 %v382
    %v473 = vunpack.c.l.b16 %v383
    %v474 = vunpack.c.h.b16 %v383
    %v475 = vunpack.c.l.b16 %v384
    %v476 = vunpack.c.h.b16 %v384
    %v477 = vunpack.c.l.b16 %v385
    %v478 = vunpack.c.h.b16 %v385
    %v479 = vunpack.c.l.b16 %v386
    %v480 = vunpack.c.h.b16 %v386
    %v481 = vunpack.c.l.b16 %v387
    %v482 = vunpack.c.h.b16 %v387
    %v483 = vunpack.c.l.b16 %v388
    %v484 = vunpack.c.h.b16 %v388
    %v485 = vunpack.c.l.b16 %v389
    %v486 = vunpack.c.h.b16 %v389
    %v487 = vunpack.c.l.b16 %v390
    %v488 = vunpack.c.h.b16 %v390
    %v489 = vunpack.c.l.b16 %v391
    %v490 = vunpack.c.h.b16 %v391
    %v491 = vunpack.c.l.b16 %v392
    %v492 = vunpack.c.h.b16 %v392
    %v493 = vunpack.c.l.b16 %v393
    %v494 = vunpack.c.h.b16 %v393
    %v495 = vunpack.c.l.b16 %v394
    %v496 = vunpack.c.h.b16 %v394
    %v497 = vunpack.c.l.b16 %v395
    %v498 = vunpack.c.h.b16 %v395
    %v499 = vunpack.c.l.b16 %v396
    %v500 = vunpack.c.h.b16 %v396
    %v501 = vunpack.c.l.b16 %v397
    %v502 = vunpack.c.h.b16 %v397
    %v503 = vunpack.c.l.b16 %v398
    %v504 = vunpack.c.h.b16 %v398
    %v505 = vunpack.c.l.b16 %v399
    %v506 = vunpack.c.h.b16 %v399
    %v507 = vunpack.c.l.b16 %v400
    %v508 = vunpack.c.h.b16 %v400
    %v509 = vunpack.c.l.b16 %v401
    %v510 = vunpack.c.h.b16 %v401
    %v511 = vunpack.c.l.b16 %v402
    %v512 = vunpack.c.h.b16 %v402
    %v513 = vpack.c.b16 %v451, %v449
    %v514 = vpack.c.b16 %v452, %v450
    %v515 = vpack.c.b16 %v455, %v453
    %v516 = vpack.c.b16 %v456, %v454
    %v517 = vpack.c.b16 %v459, %v457
    %v518 = vpack.c.b16 %v460, %v458
    %v519 = vpack.c.b16 %v463, %v461
    %v520 = vpack.c.b16 %v464, %v462
    %v521 = vpack.c.b16 %v467, %v465
    %v522 = vpack.c.b16 %v468, %v466
    %v523 = vpack.c.b16 %v471, %v469
    %v524 = vpack.c.b16 %v472, %v470
    %v525 = vpack.c.b16 %v475, %v473
    %v526 = vpack.c.b16 %v476, %v474
    %v527 = vpack.c.b16 %v479, %v477
    %v528 = vpack.c.b16 %v480, %v478
    %v529 = vpack.c.b16 %v483, %v481
    %v530 = vpack.c.b16 %v484, %v482
    %v531 = vpack.c.b16 %v487, %v485
    %v532 = vpack.c.b16 %v488, %v486
    %v533 = vpack.c.b16 %v491, %v489
    %v534 = vpack.c.b16 %v492, %v490
    %v535 = vpack.c.b16 %v495, %v493
    %v536 = vpack.c.b16 %v496, %v494
    %v537 = vpack.c.b16 %v499, %v497
    %v538 = vpack.c.b16 %v500, %v498
    %v539 = vpack.c.b16 %v503, %v501
    %v540 = vpack.c.b16 %v504, %v502
    %v541 = vpack.c.b16 %v507, %v505
    %v542 = vpack.c.b16 %v508, %v506
    %v543 = vpack.c.b16 %v511, %v509
    %v544 = vpack.c.b16 %v512, %v510
    %577 = vmatprep.subr.bf16.mxu0 %v514
    %578 = vmatpush1.bf16.msra.mxu0 %v513
    %579 = vmatprep.subr.bf16.mxu0 %v516
    %580 = vmatpush1.bf16.msra.mxu0 %v515
    %581 = vmatprep.subr.bf16.mxu0 %v518
    %582 = vmatpush1.bf16.msra.mxu0 %v517
    %583 = vmatprep.subr.bf16.mxu0 %v520
    %584 = vmatpush1.bf16.msra.mxu0 %v519
    %585 = vmatprep.subr.bf16.mxu0 %v522
    %586 = vmatpush1.bf16.msra.mxu0 %v521
    %587 = vmatprep.subr.bf16.mxu0 %v524
    %588 = vmatpush1.bf16.msra.mxu0 %v523
    %589 = vmatprep.subr.bf16.mxu0 %v526
    %590 = vmatpush1.bf16.msra.mxu0 %v525
    %591 = vmatprep.subr.bf16.mxu0 %v528
    %592 = vmatpush1.bf16.msra.mxu0 %v527
    %593 = vmatprep.subr.bf16.mxu0 %v530
    %594 = vmatpush1.bf16.msra.mxu0 %v529
    %595 = vmatprep.subr.bf16.mxu0 %v532
    %596 = vmatpush1.bf16.msra.mxu0 %v531
    %597 = vmatprep.subr.bf16.mxu0 %v534
    %598 = vmatpush1.bf16.msra.mxu0 %v533
    %599 = vmatprep.subr.bf16.mxu0 %v536
    %600 = vmatpush1.bf16.msra.mxu0 %v535
    %601 = vmatprep.subr.bf16.mxu0 %v538
    %602 = vmatpush1.bf16.msra.mxu0 %v537
    %603 = vmatprep.subr.bf16.mxu0 %v540
    %604 = vmatpush1.bf16.msra.mxu0 %v539
    %605 = vmatprep.subr.bf16.mxu0 %v542
    %606 = vmatpush1.bf16.msra.mxu0 %v541
    %607 = vmatprep.subr.bf16.mxu0 %v544
    %608 = vmatpush1.bf16.msra.mxu0 %v543
    %609 = vmatprep.mubr.bf16.mxu0 %v404
    %610 = vmatmul.mubr.bf16.gmra.mrb[0].mxu0 %v403
    %v611 = vpop.f32.mrb[0].mxu0
    %v612 = vadd.f32 %v410, %v611
    %v613 = vpop.f32.mrb[0].mxu0
    %v614 = vadd.f32 %v414, %v613
    %v615 = vpop.f32.mrb[0].mxu0
    %v616 = vpop.f32.mrb[0].mxu0
    %617 = vdwg.mxu0
    %v618 = vld [vmem:[#allocation7] sm:$0xf]
    %v619 = vld [vmem:[#allocation7 + $0x4] sm:$0xf]
    %v620 = vld [vmem:[#allocation7 + $0x8] sm:$0xf]
    %v621 = vld [vmem:[#allocation7 + $0xc] sm:$0xf]
    %v622 = vld [vmem:[#allocation7 + $0x10] sm:$0xf]
    %v623 = vld [vmem:[#allocation7 + $0x14] sm:$0xf]
    %v624 = vld [vmem:[#allocation7 + $0x18] sm:$0xf]
    %v625 = vld [vmem:[#allocation7 + $0x1c] sm:$0xf]
    %v626 = vld [vmem:[#allocation7 + $0x20] sm:$0xf]
    %v627 = vld [vmem:[#allocation7 + $0x24] sm:$0xf]
    %v628 = vld [vmem:[#allocation7 + $0x28] sm:$0xf]
    %v629 = vld [vmem:[#allocation7 + $0x2c] sm:$0xf]
    %v630 = vld [vmem:[#allocation7 + $0x30] sm:$0xf]
    %v631 = vld [vmem:[#allocation7 + $0x34] sm:$0xf]
    %v632 = vld [vmem:[#allocation7 + $0x38] sm:$0xf]
    %v633 = vld [vmem:[#allocation7 + $0x3c] sm:$0xf]
    %v634 = vld [vmem:[#allocation7 + $0x40] sm:$0xf]
    %v635 = vld [vmem:[#allocation7 + $0x44] sm:$0xf]
    %v636 = vld [vmem:[#allocation7 + $0x48] sm:$0xf]
    %v637 = vld [vmem:[#allocation7 + $0x4c] sm:$0xf]
    %v638 = vld [vmem:[#allocation7 + $0x50] sm:$0xf]
    %v639 = vld [vmem:[#allocation7 + $0x54] sm:$0xf]
    %v640 = vld [vmem:[#allocation7 + $0x58] sm:$0xf]
    %v641 = vld [vmem:[#allocation7 + $0x5c] sm:$0xf]
    %v642 = vld [vmem:[#allocation7 + $0x60] sm:$0xf]
    %v643 = vld [vmem:[#allocation7 + $0x64] sm:$0xf]
    %v644 = vld [vmem:[#allocation7 + $0x68] sm:$0xf]
    %v645 = vld [vmem:[#allocation7 + $0x6c] sm:$0xf]
    %v646 = vld [vmem:[#allocation7 + $0x70] sm:$0xf]
    %v647 = vld [vmem:[#allocation7 + $0x74] sm:$0xf]
    %v648 = vld [vmem:[#allocation7 + $0x78] sm:$0xf]
    %v649 = vld [vmem:[#allocation7 + $0x7c] sm:$0xf]
    %v650 = vpack.c.bf16 %v612, %v612
    %v651 = vpack.c.bf16 %v614, %v614
    %v652 = vld [vmem:[%s1] sm:$0xff]
    %v653 = vld [vmem:[%s5] sm:$0xf]
    %v654 = vld [vmem:[%s5 + $0x4] sm:$0xf]
    %v655 = vld [vmem:[%s5 + $0x8] sm:$0xf]
    %v656 = vld [vmem:[%s5 + $0xc] sm:$0xf]
    %v657 = vpack.c.bf16 %v652, %v652
    %v662 = vunpack.c.l.b16 %v653
    %v663 = vunpack.c.l.b16 %v654
    %v664 = vunpack.c.l.b16 %v655
    %v665 = vunpack.c.l.b16 %v656
    %v666 = vpack.c.b16 %v663, %v662
    %v667 = vpack.c.b16 %v665, %v664
    %vm670 = vcmask 261120
    %v672 = vsel %vm670, %v657, 0
    %674 = vmatprep.subr.bf16.mxu0 0
    %675 = vmatpush1.bf16.msra.mxu0 %v666
    %676 = vmatprep.subr.bf16.mxu0 0
    %677 = vmatpush1.bf16.msra.mxu0 %v667
    %678 = vmatprep.subr.bf16.mxu0 0
    %679 = vmatpush1.bf16.msra.mxu0 0
    %680 = vmatprep.subr.bf16.mxu0 0
    %681 = vmatpush1.bf16.msra.mxu0 0
    %682 = vmatprep.subr.bf16.mxu0 0
    %683 = vmatpush1.bf16.msra.mxu0 0
    %684 = vmatprep.subr.bf16.mxu0 0
    %685 = vmatpush1.bf16.msra.mxu0 0
    %686 = vmatprep.subr.bf16.mxu0 0
    %687 = vmatpush1.bf16.msra.mxu0 0
    %688 = vmatprep.subr.bf16.mxu0 0
    %689 = vmatpush1.bf16.msra.mxu0 0
    %690 = vmatprep.subr.bf16.mxu0 0
    %691 = vmatpush1.bf16.msra.mxu0 0
    %692 = vmatprep.subr.bf16.mxu0 0
    %693 = vmatpush1.bf16.msra.mxu0 0
    %694 = vmatprep.subr.bf16.mxu0 0
    %695 = vmatpush1.bf16.msra.mxu0 0
    %696 = vmatprep.subr.bf16.mxu0 0
    %697 = vmatpush1.bf16.msra.mxu0 0
    %698 = vmatprep.subr.bf16.mxu0 0
    %699 = vmatpush1.bf16.msra.mxu0 0
    %700 = vmatprep.subr.bf16.mxu0 0
    %701 = vmatpush1.bf16.msra.mxu0 0
    %702 = vmatprep.subr.bf16.mxu0 0
    %703 = vmatpush1.bf16.msra.mxu0 0
    %704 = vmatprep.subr.bf16.mxu0 0
    %705 = vmatpush1.bf16.msra.mxu0 0
    %706 = vmatprep.mubr.bf16.mxu0 0
    %707 = vmatmul.mubr.bf16.gmra.mrb[0].mxu0 %v672
    %v708 = vpop.f32.mrb[0].mxu0
    %v709 = vadd.f32 0.0, %v708
    %v710 = vpop.f32.mrb[0].mxu0
    %v711 = vpop.f32.mrb[0].mxu0
    %v712 = vpop.f32.mrb[0].mxu0
    %713 = vdwg.mxu0
    %v746 = vunpack.c.l.b16 %v618
    %v747 = vunpack.c.l.b16 %v619
    %v748 = vunpack.c.l.b16 %v620
    %v749 = vunpack.c.l.b16 %v621
    %v750 = vunpack.c.l.b16 %v622
    %v751 = vunpack.c.l.b16 %v623
    %v752 = vunpack.c.l.b16 %v624
    %v753 = vunpack.c.l.b16 %v625
    %v754 = vunpack.c.l.b16 %v626
    %v755 = vunpack.c.l.b16 %v627
    %v756 = vunpack.c.l.b16 %v628
    %v757 = vunpack.c.l.b16 %v629
    %v758 = vunpack.c.l.b16 %v630
    %v759 = vunpack.c.l.b16 %v631
    %v760 = vunpack.c.l.b16 %v632
    %v761 = vunpack.c.l.b16 %v633
    %v762 = vunpack.c.l.b16 %v634
    %v763 = vunpack.c.l.b16 %v635
    %v764 = vunpack.c.l.b16 %v636
    %v765 = vunpack.c.l.b16 %v637
    %v766 = vunpack.c.l.b16 %v638
    %v767 = vunpack.c.l.b16 %v639
    %v768 = vunpack.c.l.b16 %v640
    %v769 = vunpack.c.l.b16 %v641
    %v770 = vunpack.c.l.b16 %v642
    %v771 = vunpack.c.l.b16 %v643
    %v772 = vunpack.c.l.b16 %v644
    %v773 = vunpack.c.l.b16 %v645
    %v774 = vunpack.c.l.b16 %v646
    %v775 = vunpack.c.l.b16 %v647
    %v776 = vunpack.c.l.b16 %v648
    %v777 = vunpack.c.l.b16 %v649
    %v778 = vpack.c.b16 %v747, %v746
    %v779 = vpack.c.b16 %v749, %v748
    %v780 = vpack.c.b16 %v751, %v750
    %v781 = vpack.c.b16 %v753, %v752
    %v782 = vpack.c.b16 %v755, %v754
    %v783 = vpack.c.b16 %v757, %v756
    %v784 = vpack.c.b16 %v759, %v758
    %v785 = vpack.c.b16 %v761, %v760
    %v786 = vpack.c.b16 %v763, %v762
    %v787 = vpack.c.b16 %v765, %v764
    %v788 = vpack.c.b16 %v767, %v766
    %v789 = vpack.c.b16 %v769, %v768
    %v790 = vpack.c.b16 %v771, %v770
    %v791 = vpack.c.b16 %v773, %v772
    %v792 = vpack.c.b16 %v775, %v774
    %v793 = vpack.c.b16 %v777, %v776
    %810 = vmatprep.subr.bf16.mxu0 0
    %811 = vmatpush1.bf16.msra.mxu0 %v778
    %812 = vmatprep.subr.bf16.mxu0 0
    %813 = vmatpush1.bf16.msra.mxu0 %v779
    %814 = vmatprep.subr.bf16.mxu0 0
    %815 = vmatpush1.bf16.msra.mxu0 %v780
    %816 = vmatprep.subr.bf16.mxu0 0
    %817 = vmatpush1.bf16.msra.mxu0 %v781
    %818 = vmatprep.subr.bf16.mxu0 0
    %819 = vmatpush1.bf16.msra.mxu0 %v782
    %820 = vmatprep.subr.bf16.mxu0 0
    %821 = vmatpush1.bf16.msra.mxu0 %v783
    %822 = vmatprep.subr.bf16.mxu0 0
    %823 = vmatpush1.bf16.msra.mxu0 %v784
    %824 = vmatprep.subr.bf16.mxu0 0
    %825 = vmatpush1.bf16.msra.mxu0 %v785
    %826 = vmatprep.subr.bf16.mxu0 0
    %827 = vmatpush1.bf16.msra.mxu0 %v786
    %828 = vmatprep.subr.bf16.mxu0 0
    %829 = vmatpush1.bf16.msra.mxu0 %v787
    %830 = vmatprep.subr.bf16.mxu0 0
    %831 = vmatpush1.bf16.msra.mxu0 %v788
    %832 = vmatprep.subr.bf16.mxu0 0
    %833 = vmatpush1.bf16.msra.mxu0 %v789
    %834 = vmatprep.subr.bf16.mxu0 0
    %835 = vmatpush1.bf16.msra.mxu0 %v790
    %836 = vmatprep.subr.bf16.mxu0 0
    %837 = vmatpush1.bf16.msra.mxu0 %v791
    %838 = vmatprep.subr.bf16.mxu0 0
    %839 = vmatpush1.bf16.msra.mxu0 %v792
    %840 = vmatprep.subr.bf16.mxu0 0
    %841 = vmatpush1.bf16.msra.mxu0 %v793
    %842 = vmatprep.mubr.bf16.mxu0 %v651
    %843 = vmatmul.mubr.bf16.gmra.mrb[0].mxu0 %v650
    %v844 = vpop.f32.mrb[0].mxu0
    %v845 = vadd.f32 %v709, %v844
    %v846 = vpop.f32.mrb[0].mxu0
    %v847 = vpop.f32.mrb[0].mxu0
    %v848 = vpop.f32.mrb[0].mxu0
    %849 = vdwg.mxu0
    %v850 = vld [vmem:[%s9 + $0x4] sm:$0x1]
    %v852 = vlaneseq
    %v853 = vshrl.u32 %v852, 7
    %v854 = vsub.s32 0, %v853
    %v855 = vrot.slane %v850, %v854
    %v857 = vadd.f32 %v845, %v855
    %858 = vadd.xlane.f32.xlu0 %v857
    %v859 = vpop.xlane.xlu0 %858
    %v860 = vrcp.pop 128.0
    %v861 = vmul.f32 %v859, %v860
    %v862 = vsub.f32 %v857, %v861
    %v863 = vmul.f32 %v862, %v862
    %864 = vadd.xlane.f32.xlu0 %v863
    %v865 = vpop.xlane.xlu0 %864
    %v866 = vmul.f32 %v865, %v860
    %v867 = vadd.f32 %v866, 1e-05
    %v868 = vrsqrt.pop %v867
    %v869 = vmul.f32 %v862, %v868
    %v870 = vld [vmem:[%s9 + $0x6] sm:$0x1]
    %v872 = vlaneseq
    %v873 = vshrl.u32 %v872, 7
    %v874 = vsub.s32 0, %v873
    %v875 = vrot.slane %v870, %v874
    %v877 = vmul.f32 %v869, %v875
    %v878 = vld [vmem:[%s9 + $0x7] sm:$0x1]
    %v880 = vlaneseq
    %v881 = vshrl.u32 %v880, 7
    %v882 = vsub.s32 0, %v881
    %v883 = vrot.slane %v878, %v882
    %v885 = vadd.f32 %v877, %v883
    %v886 = vld [vmem:[#allocation8] sm:$0xff]
    %v887 = vld [vmem:[#allocation8 + $0x8] sm:$0xff]
    %v888 = vld [vmem:[#allocation8 + $0x10] sm:$0xff]
    %v889 = vld [vmem:[#allocation8 + $0x18] sm:$0xff]
    %v890 = vld [vmem:[#allocation8 + $0x20] sm:$0xff]
    %v891 = vld [vmem:[#allocation8 + $0x28] sm:$0xff]
    %v892 = vld [vmem:[#allocation8 + $0x30] sm:$0xff]
    %v893 = vld [vmem:[#allocation8 + $0x38] sm:$0xff]
    %v894 = vld [vmem:[#allocation8 + $0x40] sm:$0xff]
    %v895 = vld [vmem:[#allocation8 + $0x48] sm:$0xff]
    %v896 = vld [vmem:[#allocation8 + $0x50] sm:$0xff]
    %v897 = vld [vmem:[#allocation8 + $0x58] sm:$0xff]
    %v898 = vld [vmem:[#allocation8 + $0x60] sm:$0xff]
    %v899 = vld [vmem:[#allocation8 + $0x68] sm:$0xff]
    %v900 = vld [vmem:[#allocation8 + $0x70] sm:$0xff]
    %v901 = vld [vmem:[#allocation8 + $0x78] sm:$0xff]
    %v902 = vld [vmem:[#allocation8 + $0x80] sm:$0xff]
    %v903 = vld [vmem:[#allocation8 + $0x88] sm:$0xff]
    %v904 = vld [vmem:[#allocation8 + $0x90] sm:$0xff]
    %v905 = vld [vmem:[#allocation8 + $0x98] sm:$0xff]
    %v906 = vld [vmem:[#allocation8 + $0xa0] sm:$0xff]
    %v907 = vld [vmem:[#allocation8 + $0xa8] sm:$0xff]
    %v908 = vld [vmem:[#allocation8 + $0xb0] sm:$0xff]
    %v909 = vld [vmem:[#allocation8 + $0xb8] sm:$0xff]
    %v910 = vld [vmem:[#allocation8 + $0xc0] sm:$0xff]
    %v911 = vld [vmem:[#allocation8 + $0xc8] sm:$0xff]
    %v912 = vld [vmem:[#allocation8 + $0xd0] sm:$0xff]
    %v913 = vld [vmem:[#allocation8 + $0xd8] sm:$0xff]
    %v914 = vld [vmem:[#allocation8 + $0xe0] sm:$0xff]
    %v915 = vld [vmem:[#allocation8 + $0xe8] sm:$0xff]
    %v916 = vld [vmem:[#allocation8 + $0xf0] sm:$0xff]
    %v917 = vld [vmem:[#allocation8 + $0xf8] sm:$0xff]
    %v918 = vpack.c.bf16 %v885, %v885
    %v919 = vld [vmem:[%s9 + $0x8] sm:$0xf]
    %v921 = vlaneseq
    %v922 = vshrl.u32 %v921, 7
    %v923 = vsub.s32 0, %v922
    %v924 = vrot.slane %v919, %v923
    %v925 = vlaneseq
    %v926 = vshrl.u32 %v925, 7
    %v927 = vsub.s32 1, %v926
    %v928 = vrot.slane %v919, %v927
    %v929 = vlaneseq
    %v930 = vshrl.u32 %v929, 7
    %v931 = vsub.s32 2, %v930
    %v932 = vrot.slane %v919, %v931
    %v933 = vlaneseq
    %v934 = vshrl.u32 %v933, 7
    %v935 = vsub.s32 3, %v934
    %v936 = vrot.slane %v919, %v935
    %v973 = vunpack.c.l.b16 %v886
    %v974 = vunpack.c.h.b16 %v886
    %v975 = vunpack.c.l.b16 %v887
    %v976 = vunpack.c.h.b16 %v887
    %v977 = vunpack.c.l.b16 %v888
    %v978 = vunpack.c.h.b16 %v888
    %v979 = vunpack.c.l.b16 %v889
    %v980 = vunpack.c.h.b16 %v889
    %v981 = vunpack.c.l.b16 %v890
    %v982 = vunpack.c.h.b16 %v890
    %v983 = vunpack.c.l.b16 %v891
    %v984 = vunpack.c.h.b16 %v891
    %v985 = vunpack.c.l.b16 %v892
    %v986 = vunpack.c.h.b16 %v892
    %v987 = vunpack.c.l.b16 %v893
    %v988 = vunpack.c.h.b16 %v893
    %v989 = vunpack.c.l.b16 %v894
    %v990 = vunpack.c.h.b16 %v894
    %v991 = vunpack.c.l.b16 %v895
    %v992 = vunpack.c.h.b16 %v895
    %v993 = vunpack.c.l.b16 %v896
    %v994 = vunpack.c.h.b16 %v896
    %v995 = vunpack.c.l.b16 %v897
    %v996 = vunpack.c.h.b16 %v897
    %v997 = vunpack.c.l.b16 %v898
    %v998 = vunpack.c.h.b16 %v898
    %v999 = vunpack.c.l.b16 %v899
    %v1000 = vunpack.c.h.b16 %v899
    %v1001 = vunpack.c.l.b16 %v900
    %v1002 = vunpack.c.h.b16 %v900
    %v1003 = vunpack.c.l.b16 %v901
    %v1004 = vunpack.c.h.b16 %v901
    %v1005 = vunpack.c.l.b16 %v902
    %v1006 = vunpack.c.h.b16 %v902
    %v1007 = vunpack.c.l.b16 %v903
    %v1008 = vunpack.c.h.b16 %v903
    %v1009 = vunpack.c.l.b16 %v904
    %v1010 = vunpack.c.h.b16 %v904
    %v1011 = vunpack.c.l.b16 %v905
    %v1012 = vunpack.c.h.b16 %v905
    %v1013 = vunpack.c.l.b16 %v906
    %v1014 = vunpack.c.h.b16 %v906
    %v1015 = vunpack.c.l.b16 %v907
    %v1016 = vunpack.c.h.b16 %v907
    %v1017 = vunpack.c.l.b16 %v908
    %v1018 = vunpack.c.h.b16 %v908
    %v1019 = vunpack.c.l.b16 %v909
    %v1020 = vunpack.c.h.b16 %v909
    %v1021 = vunpack.c.l.b16 %v910
    %v1022 = vunpack.c.h.b16 %v910
    %v1023 = vunpack.c.l.b16 %v911
    %v1024 = vunpack.c.h.b16 %v911
    %v1025 = vunpack.c.l.b16 %v912
    %v1026 = vunpack.c.h.b16 %v912
    %v1027 = vunpack.c.l.b16 %v913
    %v1028 = vunpack.c.h.b16 %v913
    %v1029 = vunpack.c.l.b16 %v914
    %v1030 = vunpack.c.h.b16 %v914
    %v1031 = vunpack.c.l.b16 %v915
    %v1032 = vunpack.c.h.b16 %v915
    %v1033 = vunpack.c.l.b16 %v916
    %v1034 = vunpack.c.h.b16 %v916
    %v1035 = vunpack.c.l.b16 %v917
    %v1036 = vunpack.c.h.b16 %v917
    %v1037 = vpack.c.b16 %v977, %v973
    %v1038 = vpack.c.b16 %v978, %v974
    %v1039 = vpack.c.b16 %v979, %v975
    %v1040 = vpack.c.b16 %v980, %v976
    %v1041 = vpack.c.b16 %v985, %v981
    %v1042 = vpack.c.b16 %v986, %v982
    %v1043 = vpack.c.b16 %v987, %v983
    %v1044 = vpack.c.b16 %v988, %v984
    %v1045 = vpack.c.b16 %v993, %v989
    %v1046 = vpack.c.b16 %v994, %v990
    %v1047 = vpack.c.b16 %v995, %v991
    %v1048 = vpack.c.b16 %v996, %v992
    %v1049 = vpack.c.b16 %v1001, %v997
    %v1050 = vpack.c.b16 %v1002, %v998
    %v1051 = vpack.c.b16 %v1003, %v999
    %v1052 = vpack.c.b16 %v1004, %v1000
    %v1053 = vpack.c.b16 %v1009, %v1005
    %v1054 = vpack.c.b16 %v1010, %v1006
    %v1055 = vpack.c.b16 %v1011, %v1007
    %v1056 = vpack.c.b16 %v1012, %v1008
    %v1057 = vpack.c.b16 %v1017, %v1013
    %v1058 = vpack.c.b16 %v1018, %v1014
    %v1059 = vpack.c.b16 %v1019, %v1015
    %v1060 = vpack.c.b16 %v1020, %v1016
    %v1061 = vpack.c.b16 %v1025, %v1021
    %v1062 = vpack.c.b16 %v1026, %v1022
    %v1063 = vpack.c.b16 %v1027, %v1023
    %v1064 = vpack.c.b16 %v1028, %v1024
    %v1065 = vpack.c.b16 %v1033, %v1029
    %v1066 = vpack.c.b16 %v1034, %v1030
    %v1067 = vpack.c.b16 %v1035, %v1031
    %v1068 = vpack.c.b16 %v1036, %v1032
    %1101 = vmatprep.subr.bf16.mxu0 %v1038
    %1102 = vmatpush1.bf16.msra.mxu0 %v1037
    %1103 = vmatprep.subr.bf16.mxu0 %v1042
    %1104 = vmatpush1.bf16.msra.mxu0 %v1041
    %1105 = vmatprep.subr.bf16.mxu0 %v1046
    %1106 = vmatpush1.bf16.msra.mxu0 %v1045
    %1107 = vmatprep.subr.bf16.mxu0 %v1050
    %1108 = vmatpush1.bf16.msra.mxu0 %v1049
    %1109 = vmatprep.subr.bf16.mxu0 %v1054
    %1110 = vmatpush1.bf16.msra.mxu0 %v1053
    %1111 = vmatprep.subr.bf16.mxu0 %v1058
    %1112 = vmatpush1.bf16.msra.mxu0 %v1057
    %1113 = vmatprep.subr.bf16.mxu0 %v1062
    %1114 = vmatpush1.bf16.msra.mxu0 %v1061
    %1115 = vmatprep.subr.bf16.mxu0 %v1066
    %1116 = vmatpush1.bf16.msra.mxu0 %v1065
    %1117 = vmatprep.subr.bf16.mxu0 0
    %1118 = vmatpush1.bf16.msra.mxu0 0
    %1119 = vmatprep.subr.bf16.mxu0 0
    %1120 = vmatpush1.bf16.msra.mxu0 0
    %1121 = vmatprep.subr.bf16.mxu0 0
    %1122 = vmatpush1.bf16.msra.mxu0 0
    %1123 = vmatprep.subr.bf16.mxu0 0
    %1124 = vmatpush1.bf16.msra.mxu0 0
    %1125 = vmatprep.subr.bf16.mxu0 0
    %1126 = vmatpush1.bf16.msra.mxu0 0
    %1127 = vmatprep.subr.bf16.mxu0 0
    %1128 = vmatpush1.bf16.msra.mxu0 0
    %1129 = vmatprep.subr.bf16.mxu0 0
    %1130 = vmatpush1.bf16.msra.mxu0 0
    %1131 = vmatprep.subr.bf16.mxu0 0
    %1132 = vmatpush1.bf16.msra.mxu0 0
    %1133 = vmatprep.mubr.bf16.mxu0 0
    %1134 = vmatmul.mubr.bf16.gmra.mrb[0].mxu0 %v918
    %v1135 = vpop.f32.mrb[0].mxu0
    %v1136 = vadd.f32 %v924, %v1135
    %v1137 = vpop.f32.mrb[0].mxu0
    %v1138 = vadd.f32 %v928, %v1137
    %v1139 = vpop.f32.mrb[0].mxu0
    %v1140 = vpop.f32.mrb[0].mxu0
    %1141 = vdwg.mxu0
    %1142 = vmatprep.subr.bf16.mxu0 %v1040
    %1143 = vmatpush1.bf16.msra.mxu0 %v1039
    %1144 = vmatprep.subr.bf16.mxu0 %v1044
    %1145 = vmatpush1.bf16.msra.mxu0 %v1043
    %1146 = vmatprep.subr.bf16.mxu0 %v1048
    %1147 = vmatpush1.bf16.msra.mxu0 %v1047
    %1148 = vmatprep.subr.bf16.mxu0 %v1052
    %1149 = vmatpush1.bf16.msra.mxu0 %v1051
    %1150 = vmatprep.subr.bf16.mxu0 %v1056
    %1151 = vmatpush1.bf16.msra.mxu0 %v1055
    %1152 = vmatprep.subr.bf16.mxu0 %v1060
    %1153 = vmatpush1.bf16.msra.mxu0 %v1059
    %1154 = vmatprep.subr.bf16.mxu0 %v1064
    %1155 = vmatpush1.bf16.msra.mxu0 %v1063
    %1156 = vmatprep.subr.bf16.mxu0 %v1068
    %1157 = vmatpush1.bf16.msra.mxu0 %v1067
    %1158 = vmatprep.subr.bf16.mxu0 0
    %1159 = vmatpush1.bf16.msra.mxu0 0
    %1160 = vmatprep.subr.bf16.mxu0 0
    %1161 = vmatpush1.bf16.msra.mxu0 0
    %1162 = vmatprep.subr.bf16.mxu0 0
    %1163 = vmatpush1.bf16.msra.mxu0 0
    %1164 = vmatprep.subr.bf16.mxu0 0
    %1165 = vmatpush1.bf16.msra.mxu0 0
    %1166 = vmatprep.subr.bf16.mxu0 0
    %1167 = vmatpush1.bf16.msra.mxu0 0
    %1168 = vmatprep.subr.bf16.mxu0 0
    %1169 = vmatpush1.bf16.msra.mxu0 0
    %1170 = vmatprep.subr.bf16.mxu0 0
    %1171 = vmatpush1.bf16.msra.mxu0 0
    %1172 = vmatprep.subr.bf16.mxu0 0
    %1173 = vmatpush1.bf16.msra.mxu0 0
    %1174 = vmatprep.mubr.bf16.mxu0 0
    %1175 = vmatmul.mubr.bf16.gmra.mrb[0].mxu0 %v918
    %v1176 = vpop.f32.mrb[0].mxu0
    %v1177 = vadd.f32 %v932, %v1176
    %v1178 = vpop.f32.mrb[0].mxu0
    %v1179 = vadd.f32 %v936, %v1178
    %v1180 = vpop.f32.mrb[0].mxu0
    %v1181 = vpop.f32.mrb[0].mxu0
    %1182 = vdwg.mxu0
    %v1183 = vmax.f32 %v1136, 0.0
    %v1184 = vmax.f32 %v1138, 0.0
    %v1185 = vmax.f32 %v1177, 0.0
    %v1186 = vmax.f32 %v1179, 0.0
    %v1187 = vld [vmem:[#allocation10] sm:$0xf]
    %v1188 = vld [vmem:[#allocation10 + $0x4] sm:$0xf]
    %v1189 = vld [vmem:[#allocation10 + $0x8] sm:$0xf]
    %v1190 = vld [vmem:[#allocation10 + $0xc] sm:$0xf]
    %v1191 = vld [vmem:[#allocation10 + $0x10] sm:$0xf]
    %v1192 = vld [vmem:[#allocation10 + $0x14] sm:$0xf]
    %v1193 = vld [vmem:[#allocation10 + $0x18] sm:$0xf]
    %v1194 = vld [vmem:[#allocation10 + $0x1c] sm:$0xf]
    %v1195 = vld [vmem:[#allocation10 + $0x20] sm:$0xf]
    %v1196 = vld [vmem:[#allocation10 + $0x24] sm:$0xf]
    %v1197 = vld [vmem:[#allocation10 + $0x28] sm:$0xf]
    %v1198 = vld [vmem:[#allocation10 + $0x2c] sm:$0xf]
    %v1199 = vld [vmem:[#allocation10 + $0x30] sm:$0xf]
    %v1200 = vld [vmem:[#allocation10 + $0x34] sm:$0xf]
    %v1201 = vld [vmem:[#allocation10 + $0x38] sm:$0xf]
    %v1202 = vld [vmem:[#allocation10 + $0x3c] sm:$0xf]
    %v1203 = vld [vmem:[#allocation10 + $0x40] sm:$0xf]
    %v1204 = vld [vmem:[#allocation10 + $0x44] sm:$0xf]
    %v1205 = vld [vmem:[#allocation10 + $0x48] sm:$0xf]
    %v1206 = vld [vmem:[#allocation10 + $0x4c] sm:$0xf]
    %v1207 = vld [vmem:[#allocation10 + $0x50] sm:$0xf]
    %v1208 = vld [vmem:[#allocation10 + $0x54] sm:$0xf]
    %v1209 = vld [vmem:[#allocation10 + $0x58] sm:$0xf]
    %v1210 = vld [vmem:[#allocation10 + $0x5c] sm:$0xf]
    %v1211 = vld [vmem:[#allocation10 + $0x60] sm:$0xf]
    %v1212 = vld [vmem:[#allocation10 + $0x64] sm:$0xf]
    %v1213 = vld [vmem:[#allocation10 + $0x68] sm:$0xf]
    %v1214 = vld [vmem:[#allocation10 + $0x6c] sm:$0xf]
    %v1215 = vld [vmem:[#allocation10 + $0x70] sm:$0xf]
    %v1216 = vld [vmem:[#allocation10 + $0x74] sm:$0xf]
    %v1217 = vld [vmem:[#allocation10 + $0x78] sm:$0xf]
    %v1218 = vld [vmem:[#allocation10 + $0x7c] sm:$0xf]
    %v1219 = vld [vmem:[#allocation10 + $0x80] sm:$0xf]
    %v1220 = vld [vmem:[#allocation10 + $0x84] sm:$0xf]
    %v1221 = vld [vmem:[#allocation10 + $0x88] sm:$0xf]
    %v1222 = vld [vmem:[#allocation10 + $0x8c] sm:$0xf]
    %v1223 = vld [vmem:[#allocation10 + $0x90] sm:$0xf]
    %v1224 = vld [vmem:[#allocation10 + $0x94] sm:$0xf]
    %v1225 = vld [vmem:[#allocation10 + $0x98] sm:$0xf]
    %v1226 = vld [vmem:[#allocation10 + $0x9c] sm:$0xf]
    %v1227 = vld [vmem:[#allocation10 + $0xa0] sm:$0xf]
    %v1228 = vld [vmem:[#allocation10 + $0xa4] sm:$0xf]
    %v1229 = vld [vmem:[#allocation10 + $0xa8] sm:$0xf]
    %v1230 = vld [vmem:[#allocation10 + $0xac] sm:$0xf]
    %v1231 = vld [vmem:[#allocation10 + $0xb0] sm:$0xf]
    %v1232 = vld [vmem:[#allocation10 + $0xb4] sm:$0xf]
    %v1233 = vld [vmem:[#allocation10 + $0xb8] sm:$0xf]
    %v1234 = vld [vmem:[#allocation10 + $0xbc] sm:$0xf]
    %v1235 = vld [vmem:[#allocation10 + $0xc0] sm:$0xf]
    %v1236 = vld [vmem:[#allocation10 + $0xc4] sm:$0xf]
    %v1237 = vld [vmem:[#allocation10 + $0xc8] sm:$0xf]
    %v1238 = vld [vmem:[#allocation10 + $0xcc] sm:$0xf]
    %v1239 = vld [vmem:[#allocation10 + $0xd0] sm:$0xf]
    %v1240 = vld [vmem:[#allocation10 + $0xd4] sm:$0xf]
    %v1241 = vld [vmem:[#allocation10 + $0xd8] sm:$0xf]
    %v1242 = vld [vmem:[#allocation10 + $0xdc] sm:$0xf]
    %v1243 = vld [vmem:[#allocation10 + $0xe0] sm:$0xf]
    %v1244 = vld [vmem:[#allocation10 + $0xe4] sm:$0xf]
    %v1245 = vld [vmem:[#allocation10 + $0xe8] sm:$0xf]
    %v1246 = vld [vmem:[#allocation10 + $0xec] sm:$0xf]
    %v1247 = vld [vmem:[#allocation10 + $0xf0] sm:$0xf]
    %v1248 = vld [vmem:[#allocation10 + $0xf4] sm:$0xf]
    %v1249 = vld [vmem:[#allocation10 + $0xf8] sm:$0xf]
    %v1250 = vld [vmem:[#allocation10 + $0xfc] sm:$0xf]
    %v1251 = vpack.c.bf16 %v1183, %v1183
    %v1252 = vpack.c.bf16 %v1184, %v1184
    %v1253 = vpack.c.bf16 %v1185, %v1185
    %v1254 = vpack.c.bf16 %v1186, %v1186
    %v1319 = vunpack.c.l.b16 %v1187
    %v1320 = vunpack.c.l.b16 %v1188
    %v1321 = vunpack.c.l.b16 %v1189
    %v1322 = vunpack.c.l.b16 %v1190
    %v1323 = vunpack.c.l.b16 %v1191
    %v1324 = vunpack.c.l.b16 %v1192
    %v1325 = vunpack.c.l.b16 %v1193
    %v1326 = vunpack.c.l.b16 %v1194
    %v1327 = vunpack.c.l.b16 %v1195
    %v1328 = vunpack.c.l.b16 %v1196
    %v1329 = vunpack.c.l.b16 %v1197
    %v1330 = vunpack.c.l.b16 %v1198
    %v1331 = vunpack.c.l.b16 %v1199
    %v1332 = vunpack.c.l.b16 %v1200
    %v1333 = vunpack.c.l.b16 %v1201
    %v1334 = vunpack.c.l.b16 %v1202
    %v1335 = vunpack.c.l.b16 %v1203
    %v1336 = vunpack.c.l.b16 %v1204
    %v1337 = vunpack.c.l.b16 %v1205
    %v1338 = vunpack.c.l.b16 %v1206
    %v1339 = vunpack.c.l.b16 %v1207
    %v1340 = vunpack.c.l.b16 %v1208
    %v1341 = vunpack.c.l.b16 %v1209
    %v1342 = vunpack.c.l.b16 %v1210
    %v1343 = vunpack.c.l.b16 %v1211
    %v1344 = vunpack.c.l.b16 %v1212
    %v1345 = vunpack.c.l.b16 %v1213
    %v1346 = vunpack.c.l.b16 %v1214
    %v1347 = vunpack.c.l.b16 %v1215
    %v1348 = vunpack.c.l.b16 %v1216
    %v1349 = vunpack.c.l.b16 %v1217
    %v1350 = vunpack.c.l.b16 %v1218
    %v1351 = vunpack.c.l.b16 %v1219
    %v1352 = vunpack.c.l.b16 %v1220
    %v1353 = vunpack.c.l.b16 %v1221
    %v1354 = vunpack.c.l.b16 %v1222
    %v1355 = vunpack.c.l.b16 %v1223
    %v1356 = vunpack.c.l.b16 %v1224
    %v1357 = vunpack.c.l.b16 %v1225
    %v1358 = vunpack.c.l.b16 %v1226
    %v1359 = vunpack.c.l.b16 %v1227
    %v1360 = vunpack.c.l.b16 %v1228
    %v1361 = vunpack.c.l.b16 %v1229
    %v1362 = vunpack.c.l.b16 %v1230
    %v1363 = vunpack.c.l.b16 %v1231
    %v1364 = vunpack.c.l.b16 %v1232
    %v1365 = vunpack.c.l.b16 %v1233
    %v1366 = vunpack.c.l.b16 %v1234
    %v1367 = vunpack.c.l.b16 %v1235
    %v1368 = vunpack.c.l.b16 %v1236
    %v1369 = vunpack.c.l.b16 %v1237
    %v1370 = vunpack.c.l.b16 %v1238
    %v1371 = vunpack.c.l.b16 %v1239
    %v1372 = vunpack.c.l.b16 %v1240
    %v1373 = vunpack.c.l.b16 %v1241
    %v1374 = vunpack.c.l.b16 %v1242
    %v1375 = vunpack.c.l.b16 %v1243
    %v1376 = vunpack.c.l.b16 %v1244
    %v1377 = vunpack.c.l.b16 %v1245
    %v1378 = vunpack.c.l.b16 %v1246
    %v1379 = vunpack.c.l.b16 %v1247
    %v1380 = vunpack.c.l.b16 %v1248
    %v1381 = vunpack.c.l.b16 %v1249
    %v1382 = vunpack.c.l.b16 %v1250
    %v1383 = vpack.c.b16 %v1320, %v1319
    %v1384 = vpack.c.b16 %v1322, %v1321
    %v1385 = vpack.c.b16 %v1324, %v1323
    %v1386 = vpack.c.b16 %v1326, %v1325
    %v1387 = vpack.c.b16 %v1328, %v1327
    %v1388 = vpack.c.b16 %v1330, %v1329
    %v1389 = vpack.c.b16 %v1332, %v1331
    %v1390 = vpack.c.b16 %v1334, %v1333
    %v1391 = vpack.c.b16 %v1336, %v1335
    %v1392 = vpack.c.b16 %v1338, %v1337
    %v1393 = vpack.c.b16 %v1340, %v1339
    %v1394 = vpack.c.b16 %v1342, %v1341
    %v1395 = vpack.c.b16 %v1344, %v1343
    %v1396 = vpack.c.b16 %v1346, %v1345
    %v1397 = vpack.c.b16 %v1348, %v1347
    %v1398 = vpack.c.b16 %v1350, %v1349
    %v1399 = vpack.c.b16 %v1352, %v1351
    %v1400 = vpack.c.b16 %v1354, %v1353
    %v1401 = vpack.c.b16 %v1356, %v1355
    %v1402 = vpack.c.b16 %v1358, %v1357
    %v1403 = vpack.c.b16 %v1360, %v1359
    %v1404 = vpack.c.b16 %v1362, %v1361
    %v1405 = vpack.c.b16 %v1364, %v1363
    %v1406 = vpack.c.b16 %v1366, %v1365
    %v1407 = vpack.c.b16 %v1368, %v1367
    %v1408 = vpack.c.b16 %v1370, %v1369
    %v1409 = vpack.c.b16 %v1372, %v1371
    %v1410 = vpack.c.b16 %v1374, %v1373
    %v1411 = vpack.c.b16 %v1376, %v1375
    %v1412 = vpack.c.b16 %v1378, %v1377
    %v1413 = vpack.c.b16 %v1380, %v1379
    %v1414 = vpack.c.b16 %v1382, %v1381
    %1447 = vmatprep.subr.bf16.mxu0 0
    %1448 = vmatpush1.bf16.msra.mxu0 %v1383
    %1449 = vmatprep.subr.bf16.mxu0 0
    %1450 = vmatpush1.bf16.msra.mxu0 %v1384
    %1451 = vmatprep.subr.bf16.mxu0 0
    %1452 = vmatpush1.bf16.msra.mxu0 %v1385
    %1453 = vmatprep.subr.bf16.mxu0 0
    %1454 = vmatpush1.bf16.msra.mxu0 %v1386
    %1455 = vmatprep.subr.bf16.mxu0 0
    %1456 = vmatpush1.bf16.msra.mxu0 %v1387
    %1457 = vmatprep.subr.bf16.mxu0 0
    %1458 = vmatpush1.bf16.msra.mxu0 %v1388
    %1459 = vmatprep.subr.bf16.mxu0 0
    %1460 = vmatpush1.bf16.msra.mxu0 %v1389
    %1461 = vmatprep.subr.bf16.mxu0 0
    %1462 = vmatpush1.bf16.msra.mxu0 %v1390
    %1463 = vmatprep.subr.bf16.mxu0 0
    %1464 = vmatpush1.bf16.msra.mxu0 %v1391
    %1465 = vmatprep.subr.bf16.mxu0 0
    %1466 = vmatpush1.bf16.msra.mxu0 %v1392
    %1467 = vmatprep.subr.bf16.mxu0 0
    %1468 = vmatpush1.bf16.msra.mxu0 %v1393
    %1469 = vmatprep.subr.bf16.mxu0 0
    %1470 = vmatpush1.bf16.msra.mxu0 %v1394
    %1471 = vmatprep.subr.bf16.mxu0 0
    %1472 = vmatpush1.bf16.msra.mxu0 %v1395
    %1473 = vmatprep.subr.bf16.mxu0 0
    %1474 = vmatpush1.bf16.msra.mxu0 %v1396
    %1475 = vmatprep.subr.bf16.mxu0 0
    %1476 = vmatpush1.bf16.msra.mxu0 %v1397
    %1477 = vmatprep.subr.bf16.mxu0 0
    %1478 = vmatpush1.bf16.msra.mxu0 %v1398
    %1479 = vmatprep.mubr.bf16.mxu0 %v1252
    %1480 = vmatmul.mubr.bf16.gmra.mrb[0].mxu0 %v1251
    %v1481 = vpop.f32.mrb[0].mxu0
    %v1482 = vadd.f32 0.0, %v1481
    %v1483 = vpop.f32.mrb[0].mxu0
    %v1484 = vpop.f32.mrb[0].mxu0
    %v1485 = vpop.f32.mrb[0].mxu0
    %1486 = vdwg.mxu0
    %1487 = vmatprep.subr.bf16.mxu0 0
    %1488 = vmatpush1.bf16.msra.mxu0 %v1399
    %1489 = vmatprep.subr.bf16.mxu0 0
    %1490 = vmatpush1.bf16.msra.mxu0 %v1400
    %1491 = vmatprep.subr.bf16.mxu0 0
    %1492 = vmatpush1.bf16.msra.mxu0 %v1401
    %1493 = vmatprep.subr.bf16.mxu0 0
    %1494 = vmatpush1.bf16.msra.mxu0 %v1402
    %1495 = vmatprep.subr.bf16.mxu0 0
    %1496 = vmatpush1.bf16.msra.mxu0 %v1403
    %1497 = vmatprep.subr.bf16.mxu0 0
    %1498 = vmatpush1.bf16.msra.mxu0 %v1404
    %1499 = vmatprep.subr.bf16.mxu0 0
    %1500 = vmatpush1.bf16.msra.mxu0 %v1405
    %1501 = vmatprep.subr.bf16.mxu0 0
    %1502 = vmatpush1.bf16.msra.mxu0 %v1406
    %1503 = vmatprep.subr.bf16.mxu0 0
    %1504 = vmatpush1.bf16.msra.mxu0 %v1407
    %1505 = vmatprep.subr.bf16.mxu0 0
    %1506 = vmatpush1.bf16.msra.mxu0 %v1408
    %1507 = vmatprep.subr.bf16.mxu0 0
    %1508 = vmatpush1.bf16.msra.mxu0 %v1409
    %1509 = vmatprep.subr.bf16.mxu0 0
    %1510 = vmatpush1.bf16.msra.mxu0 %v1410
    %1511 = vmatprep.subr.bf16.mxu0 0
    %1512 = vmatpush1.bf16.msra.mxu0 %v1411
    %1513 = vmatprep.subr.bf16.mxu0 0
    %1514 = vmatpush1.bf16.msra.mxu0 %v1412
    %1515 = vmatprep.subr.bf16.mxu0 0
    %1516 = vmatpush1.bf16.msra.mxu0 %v1413
    %1517 = vmatprep.subr.bf16.mxu0 0
    %1518 = vmatpush1.bf16.msra.mxu0 %v1414
    %1519 = vmatprep.mubr.bf16.mxu0 %v1254
    %1520 = vmatmul.mubr.bf16.gmra.mrb[0].mxu0 %v1253
    %v1521 = vpop.f32.mrb[0].mxu0
    %v1522 = vadd.f32 %v1482, %v1521
    %v1523 = vpop.f32.mrb[0].mxu0
    %v1524 = vpop.f32.mrb[0].mxu0
    %v1525 = vpop.f32.mrb[0].mxu0
    %1526 = vdwg.mxu0
    %v1527 = vadd.f32 %v857, %v1522
    %v1528 = vld [vmem:[%s9 + $0xc] sm:$0x1]
    %v1530 = vlaneseq
    %v1531 = vshrl.u32 %v1530, 7
    %v1532 = vsub.s32 0, %v1531
    %v1533 = vrot.slane %v1528, %v1532
    %v1535 = vadd.f32 %v1527, %v1533
    %1536 = vadd.xlane.f32.xlu0 %v1535
    %v1537 = vpop.xlane.xlu0 %1536
    %v1538 = vmul.f32 %v1537, %v860
    %v1539 = vsub.f32 %v1535, %v1538
    %v1540 = vmul.f32 %v1539, %v1539
    %1541 = vadd.xlane.f32.xlu0 %v1540
    %v1542 = vpop.xlane.xlu0 %1541
    %v1543 = vmul.f32 %v1542, %v860
    %v1544 = vadd.f32 %v1543, 1e-05
    %v1545 = vrsqrt.pop %v1544
    %v1546 = vmul.f32 %v1539, %v1545
    %v1547 = vld [vmem:[%s9 + $0xd] sm:$0x1]
    %v1549 = vlaneseq
    %v1550 = vshrl.u32 %v1549, 7
    %v1551 = vsub.s32 0, %v1550
    %v1552 = vrot.slane %v1547, %v1551
    %v1554 = vmul.f32 %v1546, %v1552
    %v1555 = vld [vmem:[%s9 + $0xe] sm:$0x1]
    %v1557 = vlaneseq
    %v1558 = vshrl.u32 %v1557, 7
    %v1559 = vsub.s32 0, %v1558
    %v1560 = vrot.slane %v1555, %v1559
    %v1562 = vadd.f32 %v1554, %v1560
    %s1563 = scalar_lea.vmem [#allocation8], 256
    %v1564 = vld [vmem:[%s1563] sm:$0xff]
    %v1565 = vld [vmem:[%s1563 + $0x8] sm:$0xff]
    %v1566 = vld [vmem:[%s1563 + $0x10] sm:$0xff]
    %v1567 = vld [vmem:[%s1563 + $0x18] sm:$0xff]
    %v1568 = vld [vmem:[%s1563 + $0x20] sm:$0xff]
    %v1569 = vld [vmem:[%s1563 + $0x28] sm:$0xff]
    %v1570 = vld [vmem:[%s1563 + $0x30] sm:$0xff]
    %v1571 = vld [vmem:[%s1563 + $0x38] sm:$0xff]
    %v1572 = vld [vmem:[%s1563 + $0x40] sm:$0xff]
    %v1573 = vld [vmem:[%s1563 + $0x48] sm:$0xff]
    %v1574 = vld [vmem:[%s1563 + $0x50] sm:$0xff]
    %v1575 = vld [vmem:[%s1563 + $0x58] sm:$0xff]
    %v1576 = vld [vmem:[%s1563 + $0x60] sm:$0xff]
    %v1577 = vld [vmem:[%s1563 + $0x68] sm:$0xff]
    %v1578 = vld [vmem:[%s1563 + $0x70] sm:$0xff]
    %v1579 = vld [vmem:[%s1563 + $0x78] sm:$0xff]
    %v1580 = vld [vmem:[%s1563 + $0x80] sm:$0xff]
    %v1581 = vld [vmem:[%s1563 + $0x88] sm:$0xff]
    %v1582 = vld [vmem:[%s1563 + $0x90] sm:$0xff]
    %v1583 = vld [vmem:[%s1563 + $0x98] sm:$0xff]
    %v1584 = vld [vmem:[%s1563 + $0xa0] sm:$0xff]
    %v1585 = vld [vmem:[%s1563 + $0xa8] sm:$0xff]
    %v1586 = vld [vmem:[%s1563 + $0xb0] sm:$0xff]
    %v1587 = vld [vmem:[%s1563 + $0xb8] sm:$0xff]
    %v1588 = vld [vmem:[%s1563 + $0xc0] sm:$0xff]
    %v1589 = vld [vmem:[%s1563 + $0xc8] sm:$0xff]
    %v1590 = vld [vmem:[%s1563 + $0xd0] sm:$0xff]
    %v1591 = vld [vmem:[%s1563 + $0xd8] sm:$0xff]
    %v1592 = vld [vmem:[%s1563 + $0xe0] sm:$0xff]
    %v1593 = vld [vmem:[%s1563 + $0xe8] sm:$0xff]
    %v1594 = vld [vmem:[%s1563 + $0xf0] sm:$0xff]
    %v1595 = vld [vmem:[%s1563 + $0xf8] sm:$0xff]
    %v1596 = vpack.c.bf16 %v1562, %v1562
    %v1597 = vld [vmem:[%s9 + $0xf] sm:$0xf]
    %v1599 = vlaneseq
    %v1600 = vshrl.u32 %v1599, 7
    %v1601 = vsub.s32 0, %v1600
    %v1602 = vrot.slane %v1597, %v1601
    %v1603 = vlaneseq
    %v1604 = vshrl.u32 %v1603, 7
    %v1605 = vsub.s32 1, %v1604
    %v1606 = vrot.slane %v1597, %v1605
    %v1607 = vlaneseq
    %v1608 = vshrl.u32 %v1607, 7
    %v1609 = vsub.s32 2, %v1608
    %v1610 = vrot.slane %v1597, %v1609
    %v1611 = vlaneseq
    %v1612 = vshrl.u32 %v1611, 7
    %v1613 = vsub.s32 3, %v1612
    %v1614 = vrot.slane %v1597, %v1613
    %v1651 = vunpack.c.l.b16 %v1564
    %v1652 = vunpack.c.h.b16 %v1564
    %v1653 = vunpack.c.l.b16 %v1565
    %v1654 = vunpack.c.h.b16 %v1565
    %v1655 = vunpack.c.l.b16 %v1566
    %v1656 = vunpack.c.h.b16 %v1566
    %v1657 = vunpack.c.l.b16 %v1567
    %v1658 = vunpack.c.h.b16 %v1567
    %v1659 = vunpack.c.l.b16 %v1568
    %v1660 = vunpack.c.h.b16 %v1568
    %v1661 = vunpack.c.l.b16 %v1569
    %v1662 = vunpack.c.h.b16 %v1569
    %v1663 = vunpack.c.l.b16 %v1570
    %v1664 = vunpack.c.h.b16 %v1570
    %v1665 = vunpack.c.l.b16 %v1571
    %v1666 = vunpack.c.h.b16 %v1571
    %v1667 = vunpack.c.l.b16 %v1572
    %v1668 = vunpack.c.h.b16 %v1572
    %v1669 = vunpack.c.l.b16 %v1573
    %v1670 = vunpack.c.h.b16 %v1573
    %v1671 = vunpack.c.l.b16 %v1574
    %v1672 = vunpack.c.h.b16 %v1574
    %v1673 = vunpack.c.l.b16 %v1575
    %v1674 = vunpack.c.h.b16 %v1575
    %v1675 = vunpack.c.l.b16 %v1576
    %v1676 = vunpack.c.h.b16 %v1576
    %v1677 = vunpack.c.l.b16 %v1577
    %v1678 = vunpack.c.h.b16 %v1577
    %v1679 = vunpack.c.l.b16 %v1578
    %v1680 = vunpack.c.h.b16 %v1578
    %v1681 = vunpack.c.l.b16 %v1579
    %v1682 = vunpack.c.h.b16 %v1579
    %v1683 = vunpack.c.l.b16 %v1580
    %v1684 = vunpack.c.h.b16 %v1580
    %v1685 = vunpack.c.l.b16 %v1581
    %v1686 = vunpack.c.h.b16 %v1581
    %v1687 = vunpack.c.l.b16 %v1582
    %v1688 = vunpack.c.h.b16 %v1582
    %v1689 = vunpack.c.l.b16 %v1583
    %v1690 = vunpack.c.h.b16 %v1583
    %v1691 = vunpack.c.l.b16 %v1584
    %v1692 = vunpack.c.h.b16 %v1584
    %v1693 = vunpack.c.l.b16 %v1585
    %v1694 = vunpack.c.h.b16 %v1585
    %v1695 = vunpack.c.l.b16 %v1586
    %v1696 = vunpack.c.h.b16 %v1586
    %v1697 = vunpack.c.l.b16 %v1587
    %v1698 = vunpack.c.h.b16 %v1587
    %v1699 = vunpack.c.l.b16 %v1588
    %v1700 = vunpack.c.h.b16 %v1588
    %v1701 = vunpack.c.l.b16 %v1589
    %v1702 = vunpack.c.h.b16 %v1589
    %v1703 = vunpack.c.l.b16 %v1590
    %v1704 = vunpack.c.h.b16 %v1590
    %v1705 = vunpack.c.l.b16 %v1591
    %v1706 = vunpack.c.h.b16 %v1591
    %v1707 = vunpack.c.l.b16 %v1592
    %v1708 = vunpack.c.h.b16 %v1592
    %v1709 = vunpack.c.l.b16 %v1593
    %v1710 = vunpack.c.h.b16 %v1593
    %v1711 = vunpack.c.l.b16 %v1594
    %v1712 = vunpack.c.h.b16 %v1594
    %v1713 = vunpack.c.l.b16 %v1595
    %v1714 = vunpack.c.h.b16 %v1595
    %v1715 = vpack.c.b16 %v1655, %v1651
    %v1716 = vpack.c.b16 %v1656, %v1652
    %v1717 = vpack.c.b16 %v1657, %v1653
    %v1718 = vpack.c.b16 %v1658, %v1654
    %v1719 = vpack.c.b16 %v1663, %v1659
    %v1720 = vpack.c.b16 %v1664, %v1660
    %v1721 = vpack.c.b16 %v1665, %v1661
    %v1722 = vpack.c.b16 %v1666, %v1662
    %v1723 = vpack.c.b16 %v1671, %v1667
    %v1724 = vpack.c.b16 %v1672, %v1668
    %v1725 = vpack.c.b16 %v1673, %v1669
    %v1726 = vpack.c.b16 %v1674, %v1670
    %v1727 = vpack.c.b16 %v1679, %v1675
    %v1728 = vpack.c.b16 %v1680, %v1676
    %v1729 = vpack.c.b16 %v1681, %v1677
    %v1730 = vpack.c.b16 %v1682, %v1678
    %v1731 = vpack.c.b16 %v1687, %v1683
    %v1732 = vpack.c.b16 %v1688, %v1684
    %v1733 = vpack.c.b16 %v1689, %v1685
    %v1734 = vpack.c.b16 %v1690, %v1686
    %v1735 = vpack.c.b16 %v1695, %v1691
    %v1736 = vpack.c.b16 %v1696, %v1692
    %v1737 = vpack.c.b16 %v1697, %v1693
    %v1738 = vpack.c.b16 %v1698, %v1694
    %v1739 = vpack.c.b16 %v1703, %v1699
    %v1740 = vpack.c.b16 %v1704, %v1700
    %v1741 = vpack.c.b16 %v1705, %v1701
    %v1742 = vpack.c.b16 %v1706, %v1702
    %v1743 = vpack.c.b16 %v1711, %v1707
    %v1744 = vpack.c.b16 %v1712, %v1708
    %v1745 = vpack.c.b16 %v1713, %v1709
    %v1746 = vpack.c.b16 %v1714, %v1710
    %1779 = vmatprep.subr.bf16.mxu0 %v1716
    %1780 = vmatpush1.bf16.msra.mxu0 %v1715
    %1781 = vmatprep.subr.bf16.mxu0 %v1720
    %1782 = vmatpush1.bf16.msra.mxu0 %v1719
    %1783 = vmatprep.subr.bf16.mxu0 %v1724
    %1784 = vmatpush1.bf16.msra.mxu0 %v1723
    %1785 = vmatprep.subr.bf16.mxu0 %v1728
    %1786 = vmatpush1.bf16.msra.mxu0 %v1727
    %1787 = vmatprep.subr.bf16.mxu0 %v1732
    %1788 = vmatpush1.bf16.msra.mxu0 %v1731
    %1789 = vmatprep.subr.bf16.mxu0 %v1736
    %1790 = vmatpush1.bf16.msra.mxu0 %v1735
    %1791 = vmatprep.subr.bf16.mxu0 %v1740
    %1792 = vmatpush1.bf16.msra.mxu0 %v1739
    %1793 = vmatprep.subr.bf16.mxu0 %v1744
    %1794 = vmatpush1.bf16.msra.mxu0 %v1743
    %1795 = vmatprep.subr.bf16.mxu0 0
    %1796 = vmatpush1.bf16.msra.mxu0 0
    %1797 = vmatprep.subr.bf16.mxu0 0
    %1798 = vmatpush1.bf16.msra.mxu0 0
    %1799 = vmatprep.subr.bf16.mxu0 0
    %1800 = vmatpush1.bf16.msra.mxu0 0
    %1801 = vmatprep.subr.bf16.mxu0 0
    %1802 = vmatpush1.bf16.msra.mxu0 0
    %1803 = vmatprep.subr.bf16.mxu0 0
    %1804 = vmatpush1.bf16.msra.mxu0 0
    %1805 = vmatprep.subr.bf16.mxu0 0
    %1806 = vmatpush1.bf16.msra.mxu0 0
    %1807 = vmatprep.subr.bf16.mxu0 0
    %1808 = vmatpush1.bf16.msra.mxu0 0
    %1809 = vmatprep.subr.bf16.mxu0 0
    %1810 = vmatpush1.bf16.msra.mxu0 0
    %1811 = vmatprep.mubr.bf16.mxu0 0
    %1812 = vmatmul.mubr.bf16.gmra.mrb[0].mxu0 %v1596
    %v1813 = vpop.f32.mrb[0].mxu0
    %v1814 = vadd.f32 %v1602, %v1813
    %v1815 = vpop.f32.mrb[0].mxu0
    %v1816 = vadd.f32 %v1606, %v1815
    %v1817 = vpop.f32.mrb[0].mxu0
    %v1818 = vpop.f32.mrb[0].mxu0
    %1819 = vdwg.mxu0
    %1820 = vmatprep.subr.bf16.mxu0 %v1718
    %1821 = vmatpush1.bf16.msra.mxu0 %v1717
    %1822 = vmatprep.subr.bf16.mxu0 %v1722
    %1823 = vmatpush1.bf16.msra.mxu0 %v1721
    %1824 = vmatprep.subr.bf16.mxu0 %v1726
    %1825 = vmatpush1.bf16.msra.mxu0 %v1725
    %1826 = vmatprep.subr.bf16.mxu0 %v1730
    %1827 = vmatpush1.bf16.msra.mxu0 %v1729
    %1828 = vmatprep.subr.bf16.mxu0 %v1734
    %1829 = vmatpush1.bf16.msra.mxu0 %v1733
    %1830 = vmatprep.subr.bf16.mxu0 %v1738
    %1831 = vmatpush1.bf16.msra.mxu0 %v1737
    %1832 = vmatprep.subr.bf16.mxu0 %v1742
    %1833 = vmatpush1.bf16.msra.mxu0 %v1741
    %1834 = vmatprep.subr.bf16.mxu0 %v1746
    %1835 = vmatpush1.bf16.msra.mxu0 %v1745
    %1836 = vmatprep.subr.bf16.mxu0 0
    %1837 = vmatpush1.bf16.msra.mxu0 0
    %1838 = vmatprep.subr.bf16.mxu0 0
    %1839 = vmatpush1.bf16.msra.mxu0 0
    %1840 = vmatprep.subr.bf16.mxu0 0
    %1841 = vmatpush1.bf16.msra.mxu0 0
    %1842 = vmatprep.subr.bf16.mxu0 0
    %1843 = vmatpush1.bf16.msra.mxu0 0
    %1844 = vmatprep.subr.bf16.mxu0 0
    %1845 = vmatpush1.bf16.msra.mxu0 0
    %1846 = vmatprep.subr.bf16.mxu0 0
    %1847 = vmatpush1.bf16.msra.mxu0 0
    %1848 = vmatprep.subr.bf16.mxu0 0
    %1849 = vmatpush1.bf16.msra.mxu0 0
    %1850 = vmatprep.subr.bf16.mxu0 0
    %1851 = vmatpush1.bf16.msra.mxu0 0
    %1852 = vmatprep.mubr.bf16.mxu0 0
    %1853 = vmatmul.mubr.bf16.gmra.mrb[0].mxu0 %v1596
    %v1854 = vpop.f32.mrb[0].mxu0
    %v1855 = vadd.f32 %v1610, %v1854
    %v1856 = vpop.f32.mrb[0].mxu0
    %v1857 = vadd.f32 %v1614, %v1856
    %v1858 = vpop.f32.mrb[0].mxu0
    %v1859 = vpop.f32.mrb[0].mxu0
    %1860 = vdwg.mxu0
    %v1861 = vmax.f32 %v1814, 0.0
    %v1862 = vmax.f32 %v1816, 0.0
    %v1863 = vmax.f32 %v1855, 0.0
    %v1864 = vmax.f32 %v1857, 0.0
    %s1865 = scalar_lea.vmem [#allocation10], 256
    %v1866 = vld [vmem:[%s1865] sm:$0xf]
    %v1867 = vld [vmem:[%s1865 + $0x4] sm:$0xf]
    %v1868 = vld [vmem:[%s1865 + $0x8] sm:$0xf]
    %v1869 = vld [vmem:[%s1865 + $0xc] sm:$0xf]
    %v1870 = vld [vmem:[%s1865 + $0x10] sm:$0xf]
    %v1871 = vld [vmem:[%s1865 + $0x14] sm:$0xf]
    %v1872 = vld [vmem:[%s1865 + $0x18] sm:$0xf]
    %v1873 = vld [vmem:[%s1865 + $0x1c] sm:$0xf]
    %v1874 = vld [vmem:[%s1865 + $0x20] sm:$0xf]
    %v1875 = vld [vmem:[%s1865 + $0x24] sm:$0xf]
    %v1876 = vld [vmem:[%s1865 + $0x28] sm:$0xf]
    %v1877 = vld [vmem:[%s1865 + $0x2c] sm:$0xf]
    %v1878 = vld [vmem:[%s1865 + $0x30] sm:$0xf]
    %v1879 = vld [vmem:[%s1865 + $0x34] sm:$0xf]
    %v1880 = vld [vmem:[%s1865 + $0x38] sm:$0xf]
    %v1881 = vld [vmem:[%s1865 + $0x3c] sm:$0xf]
    %v1882 = vld [vmem:[%s1865 + $0x40] sm:$0xf]
    %v1883 = vld [vmem:[%s1865 + $0x44] sm:$0xf]
    %v1884 = vld [vmem:[%s1865 + $0x48] sm:$0xf]
    %v1885 = vld [vmem:[%s1865 + $0x4c] sm:$0xf]
    %v1886 = vld [vmem:[%s1865 + $0x50] sm:$0xf]
    %v1887 = vld [vmem:[%s1865 + $0x54] sm:$0xf]
    %v1888 = vld [vmem:[%s1865 + $0x58] sm:$0xf]
    %v1889 = vld [vmem:[%s1865 + $0x5c] sm:$0xf]
    %v1890 = vld [vmem:[%s1865 + $0x60] sm:$0xf]
    %v1891 = vld [vmem:[%s1865 + $0x64] sm:$0xf]
    %v1892 = vld [vmem:[%s1865 + $0x68] sm:$0xf]
    %v1893 = vld [vmem:[%s1865 + $0x6c] sm:$0xf]
    %v1894 = vld [vmem:[%s1865 + $0x70] sm:$0xf]
    %v1895 = vld [vmem:[%s1865 + $0x74] sm:$0xf]
    %v1896 = vld [vmem:[%s1865 + $0x78] sm:$0xf]
    %v1897 = vld [vmem:[%s1865 + $0x7c] sm:$0xf]
    %v1898 = vld [vmem:[%s1865 + $0x80] sm:$0xf]
    %v1899 = vld [vmem:[%s1865 + $0x84] sm:$0xf]
    %v1900 = vld [vmem:[%s1865 + $0x88] sm:$0xf]
    %v1901 = vld [vmem:[%s1865 + $0x8c] sm:$0xf]
    %v1902 = vld [vmem:[%s1865 + $0x90] sm:$0xf]
    %v1903 = vld [vmem:[%s1865 + $0x94] sm:$0xf]
    %v1904 = vld [vmem:[%s1865 + $0x98] sm:$0xf]
    %v1905 = vld [vmem:[%s1865 + $0x9c] sm:$0xf]
    %v1906 = vld [vmem:[%s1865 + $0xa0] sm:$0xf]
    %v1907 = vld [vmem:[%s1865 + $0xa4] sm:$0xf]
    %v1908 = vld [vmem:[%s1865 + $0xa8] sm:$0xf]
    %v1909 = vld [vmem:[%s1865 + $0xac] sm:$0xf]
    %v1910 = vld [vmem:[%s1865 + $0xb0] sm:$0xf]
    %v1911 = vld [vmem:[%s1865 + $0xb4] sm:$0xf]
    %v1912 = vld [vmem:[%s1865 + $0xb8] sm:$0xf]
    %v1913 = vld [vmem:[%s1865 + $0xbc] sm:$0xf]
    %v1914 = vld [vmem:[%s1865 + $0xc0] sm:$0xf]
    %v1915 = vld [vmem:[%s1865 + $0xc4] sm:$0xf]
    %v1916 = vld [vmem:[%s1865 + $0xc8] sm:$0xf]
    %v1917 = vld [vmem:[%s1865 + $0xcc] sm:$0xf]
    %v1918 = vld [vmem:[%s1865 + $0xd0] sm:$0xf]
    %v1919 = vld [vmem:[%s1865 + $0xd4] sm:$0xf]
    %v1920 = vld [vmem:[%s1865 + $0xd8] sm:$0xf]
    %v1921 = vld [vmem:[%s1865 + $0xdc] sm:$0xf]
    %v1922 = vld [vmem:[%s1865 + $0xe0] sm:$0xf]
    %v1923 = vld [vmem:[%s1865 + $0xe4] sm:$0xf]
    %v1924 = vld [vmem:[%s1865 + $0xe8] sm:$0xf]
    %v1925 = vld [vmem:[%s1865 + $0xec] sm:$0xf]
    %v1926 = vld [vmem:[%s1865 + $0xf0] sm:$0xf]
    %v1927 = vld [vmem:[%s1865 + $0xf4] sm:$0xf]
    %v1928 = vld [vmem:[%s1865 + $0xf8] sm:$0xf]
    %v1929 = vld [vmem:[%s1865 + $0xfc] sm:$0xf]
    %v1930 = vpack.c.bf16 %v1861, %v1861
    %v1931 = vpack.c.bf16 %v1862, %v1862
    %v1932 = vpack.c.bf16 %v1863, %v1863
    %v1933 = vpack.c.bf16 %v1864, %v1864
    %v1998 = vunpack.c.l.b16 %v1866
    %v1999 = vunpack.c.l.b16 %v1867
    %v2000 = vunpack.c.l.b16 %v1868
    %v2001 = vunpack.c.l.b16 %v1869
    %v2002 = vunpack.c.l.b16 %v1870
    %v2003 = vunpack.c.l.b16 %v1871
    %v2004 = vunpack.c.l.b16 %v1872
    %v2005 = vunpack.c.l.b16 %v1873
    %v2006 = vunpack.c.l.b16 %v1874
    %v2007 = vunpack.c.l.b16 %v1875
    %v2008 = vunpack.c.l.b16 %v1876
    %v2009 = vunpack.c.l.b16 %v1877
    %v2010 = vunpack.c.l.b16 %v1878
    %v2011 = vunpack.c.l.b16 %v1879
    %v2012 = vunpack.c.l.b16 %v1880
    %v2013 = vunpack.c.l.b16 %v1881
    %v2014 = vunpack.c.l.b16 %v1882
    %v2015 = vunpack.c.l.b16 %v1883
    %v2016 = vunpack.c.l.b16 %v1884
    %v2017 = vunpack.c.l.b16 %v1885
    %v2018 = vunpack.c.l.b16 %v1886
    %v2019 = vunpack.c.l.b16 %v1887
    %v2020 = vunpack.c.l.b16 %v1888
    %v2021 = vunpack.c.l.b16 %v1889
    %v2022 = vunpack.c.l.b16 %v1890
    %v2023 = vunpack.c.l.b16 %v1891
    %v2024 = vunpack.c.l.b16 %v1892
    %v2025 = vunpack.c.l.b16 %v1893
    %v2026 = vunpack.c.l.b16 %v1894
    %v2027 = vunpack.c.l.b16 %v1895
    %v2028 = vunpack.c.l.b16 %v1896
    %v2029 = vunpack.c.l.b16 %v1897
    %v2030 = vunpack.c.l.b16 %v1898
    %v2031 = vunpack.c.l.b16 %v1899
    %v2032 = vunpack.c.l.b16 %v1900
    %v2033 = vunpack.c.l.b16 %v1901
    %v2034 = vunpack.c.l.b16 %v1902
    %v2035 = vunpack.c.l.b16 %v1903
    %v2036 = vunpack.c.l.b16 %v1904
    %v2037 = vunpack.c.l.b16 %v1905
    %v2038 = vunpack.c.l.b16 %v1906
    %v2039 = vunpack.c.l.b16 %v1907
    %v2040 = vunpack.c.l.b16 %v1908
    %v2041 = vunpack.c.l.b16 %v1909
    %v2042 = vunpack.c.l.b16 %v1910
    %v2043 = vunpack.c.l.b16 %v1911
    %v2044 = vunpack.c.l.b16 %v1912
    %v2045 = vunpack.c.l.b16 %v1913
    %v2046 = vunpack.c.l.b16 %v1914
    %v2047 = vunpack.c.l.b16 %v1915
    %v2048 = vunpack.c.l.b16 %v1916
    %v2049 = vunpack.c.l.b16 %v1917
    %v2050 = vunpack.c.l.b16 %v1918
    %v2051 = vunpack.c.l.b16 %v1919
    %v2052 = vunpack.c.l.b16 %v1920
    %v2053 = vunpack.c.l.b16 %v1921
    %v2054 = vunpack.c.l.b16 %v1922
    %v2055 = vunpack.c.l.b16 %v1923
    %v2056 = vunpack.c.l.b16 %v1924
    %v2057 = vunpack.c.l.b16 %v1925
    %v2058 = vunpack.c.l.b16 %v1926
    %v2059 = vunpack.c.l.b16 %v1927
    %v2060 = vunpack.c.l.b16 %v1928
    %v2061 = vunpack.c.l.b16 %v1929
    %v2062 = vpack.c.b16 %v1999, %v1998
    %v2063 = vpack.c.b16 %v2001, %v2000
    %v2064 = vpack.c.b16 %v2003, %v2002
    %v2065 = vpack.c.b16 %v2005, %v2004
    %v2066 = vpack.c.b16 %v2007, %v2006
    %v2067 = vpack.c.b16 %v2009, %v2008
    %v2068 = vpack.c.b16 %v2011, %v2010
    %v2069 = vpack.c.b16 %v2013, %v2012
    %v2070 = vpack.c.b16 %v2015, %v2014
    %v2071 = vpack.c.b16 %v2017, %v2016
    %v2072 = vpack.c.b16 %v2019, %v2018
    %v2073 = vpack.c.b16 %v2021, %v2020
    %v2074 = vpack.c.b16 %v2023, %v2022
    %v2075 = vpack.c.b16 %v2025, %v2024
    %v2076 = vpack.c.b16 %v2027, %v2026
    %v2077 = vpack.c.b16 %v2029, %v2028
    %v2078 = vpack.c.b16 %v2031, %v2030
    %v2079 = vpack.c.b16 %v2033, %v2032
    %v2080 = vpack.c.b16 %v2035, %v2034
    %v2081 = vpack.c.b16 %v2037, %v2036
    %v2082 = vpack.c.b16 %v2039, %v2038
    %v2083 = vpack.c.b16 %v2041, %v2040
    %v2084 = vpack.c.b16 %v2043, %v2042
    %v2085 = vpack.c.b16 %v2045, %v2044
    %v2086 = vpack.c.b16 %v2047, %v2046
    %v2087 = vpack.c.b16 %v2049, %v2048
    %v2088 = vpack.c.b16 %v2051, %v2050
    %v2089 = vpack.c.b16 %v2053, %v2052
    %v2090 = vpack.c.b16 %v2055, %v2054
    %v2091 = vpack.c.b16 %v2057, %v2056
    %v2092 = vpack.c.b16 %v2059, %v2058
    %v2093 = vpack.c.b16 %v2061, %v2060
    %2126 = vmatprep.subr.bf16.mxu0 0
    %2127 = vmatpush1.bf16.msra.mxu0 %v2062
    %2128 = vmatprep.subr.bf16.mxu0 0
    %2129 = vmatpush1.bf16.msra.mxu0 %v2063
    %2130 = vmatprep.subr.bf16.mxu0 0
    %2131 = vmatpush1.bf16.msra.mxu0 %v2064
    %2132 = vmatprep.subr.bf16.mxu0 0
    %2133 = vmatpush1.bf16.msra.mxu0 %v2065
    %2134 = vmatprep.subr.bf16.mxu0 0
    %2135 = vmatpush1.bf16.msra.mxu0 %v2066
    %2136 = vmatprep.subr.bf16.mxu0 0
    %2137 = vmatpush1.bf16.msra.mxu0 %v2067
    %2138 = vmatprep.subr.bf16.mxu0 0
    %2139 = vmatpush1.bf16.msra.mxu0 %v2068
    %2140 = vmatprep.subr.bf16.mxu0 0
    %2141 = vmatpush1.bf16.msra.mxu0 %v2069
    %2142 = vmatprep.subr.bf16.mxu0 0
    %2143 = vmatpush1.bf16.msra.mxu0 %v2070
    %2144 = vmatprep.subr.bf16.mxu0 0
    %2145 = vmatpush1.bf16.msra.mxu0 %v2071
    %2146 = vmatprep.subr.bf16.mxu0 0
    %2147 = vmatpush1.bf16.msra.mxu0 %v2072
    %2148 = vmatprep.subr.bf16.mxu0 0
    %2149 = vmatpush1.bf16.msra.mxu0 %v2073
    %2150 = vmatprep.subr.bf16.mxu0 0
    %2151 = vmatpush1.bf16.msra.mxu0 %v2074
    %2152 = vmatprep.subr.bf16.mxu0 0
    %2153 = vmatpush1.bf16.msra.mxu0 %v2075
    %2154 = vmatprep.subr.bf16.mxu0 0
    %2155 = vmatpush1.bf16.msra.mxu0 %v2076
    %2156 = vmatprep.subr.bf16.mxu0 0
    %2157 = vmatpush1.bf16.msra.mxu0 %v2077
    %2158 = vmatprep.mubr.bf16.mxu0 %v1931
    %2159 = vmatmul.mubr.bf16.gmra.mrb[0].mxu0 %v1930
    %v2160 = vpop.f32.mrb[0].mxu0
    %v2161 = vadd.f32 0.0, %v2160
    %v2162 = vpop.f32.mrb[0].mxu0
    %v2163 = vpop.f32.mrb[0].mxu0
    %v2164 = vpop.f32.mrb[0].mxu0
    %2165 = vdwg.mxu0
    %2166 = vmatprep.subr.bf16.mxu0 0
    %2167 = vmatpush1.bf16.msra.mxu0 %v2078
    %2168 = vmatprep.subr.bf16.mxu0 0
    %2169 = vmatpush1.bf16.msra.mxu0 %v2079
    %2170 = vmatprep.subr.bf16.mxu0 0
    %2171 = vmatpush1.bf16.msra.mxu0 %v2080
    %2172 = vmatprep.subr.bf16.mxu0 0
    %2173 = vmatpush1.bf16.msra.mxu0 %v2081
    %2174 = vmatprep.subr.bf16.mxu0 0
    %2175 = vmatpush1.bf16.msra.mxu0 %v2082
    %2176 = vmatprep.subr.bf16.mxu0 0
    %2177 = vmatpush1.bf16.msra.mxu0 %v2083
    %2178 = vmatprep.subr.bf16.mxu0 0
    %2179 = vmatpush1.bf16.msra.mxu0 %v2084
    %2180 = vmatprep.subr.bf16.mxu0 0
    %2181 = vmatpush1.bf16.msra.mxu0 %v2085
    %2182 = vmatprep.subr.bf16.mxu0 0
    %2183 = vmatpush1.bf16.msra.mxu0 %v2086
    %2184 = vmatprep.subr.bf16.mxu0 0
    %2185 = vmatpush1.bf16.msra.mxu0 %v2087
    %2186 = vmatprep.subr.bf16.mxu0 0
    %2187 = vmatpush1.bf16.msra.mxu0 %v2088
    %2188 = vmatprep.subr.bf16.mxu0 0
    %2189 = vmatpush1.bf16.msra.mxu0 %v2089
    %2190 = vmatprep.subr.bf16.mxu0 0
    %2191 = vmatpush1.bf16.msra.mxu0 %v2090
    %2192 = vmatprep.subr.bf16.mxu0 0
    %2193 = vmatpush1.bf16.msra.mxu0 %v2091
    %2194 = vmatprep.subr.bf16.mxu0 0
    %2195 = vmatpush1.bf16.msra.mxu0 %v2092
    %2196 = vmatprep.subr.bf16.mxu0 0
    %2197 = vmatpush1.bf16.msra.mxu0 %v2093
    %2198 = vmatprep.mubr.bf16.mxu0 %v1933
    %2199 = vmatmul.mubr.bf16.gmra.mrb[0].mxu0 %v1932
    %v2200 = vpop.f32.mrb[0].mxu0
    %v2201 = vadd.f32 %v2161, %v2200
    %v2202 = vpop.f32.mrb[0].mxu0
    %v2203 = vpop.f32.mrb[0].mxu0
    %v2204 = vpop.f32.mrb[0].mxu0
    %2205 = vdwg.mxu0
    %v2206 = vadd.f32 %v1535, %v2201
    %v2207 = vld [vmem:[%s9 + $0x13] sm:$0x1]
    %v2209 = vlaneseq
    %v2210 = vshrl.u32 %v2209, 7
    %v2211 = vsub.s32 0, %v2210
    %v2212 = vrot.slane %v2207, %v2211
    %v2214 = vadd.f32 %v2206, %v2212
    %2215 = vadd.xlane.f32.xlu0 %v2214
    %v2216 = vpop.xlane.xlu0 %2215
    %v2217 = vmul.f32 %v2216, %v860
    %v2218 = vsub.f32 %v2214, %v2217
    %v2219 = vmul.f32 %v2218, %v2218
    %2220 = vadd.xlane.f32.xlu0 %v2219
    %v2221 = vpop.xlane.xlu0 %2220
    %v2222 = vmul.f32 %v2221, %v860
    %v2223 = vadd.f32 %v2222, 1e-05
    %v2224 = vrsqrt.pop %v2223
    %v2225 = vmul.f32 %v2218, %v2224
    %2226 = vst [vmem:[#allocation11] sm:$0xff] %v2225
    %v2227 = vld [vmem:[%s8] sm:$0xf]
    %v2228 = vld [vmem:[%s8 + $0x4] sm:$0xf]
    %v2229 = vld [vmem:[%s8 + $0x8] sm:$0xf]
    %v2230 = vld [vmem:[%s8 + $0xc] sm:$0xf]
    %v2231 = vld [vmem:[%s8 + $0x10] sm:$0xf]
    %v2232 = vld [vmem:[%s8 + $0x14] sm:$0xf]
    %v2233 = vld [vmem:[%s8 + $0x18] sm:$0xf]
    %v2234 = vld [vmem:[%s8 + $0x1c] sm:$0xf]
    %v2235 = vld [vmem:[%s8 + $0x20] sm:$0xf]
    %v2236 = vld [vmem:[%s8 + $0x24] sm:$0xf]
    %v2237 = vld [vmem:[%s8 + $0x28] sm:$0xf]
    %v2238 = vld [vmem:[%s8 + $0x2c] sm:$0xf]
    %v2239 = vld [vmem:[%s8 + $0x30] sm:$0xf]
    %v2240 = vld [vmem:[%s8 + $0x34] sm:$0xf]
    %v2241 = vld [vmem:[%s8 + $0x38] sm:$0xf]
    %v2242 = vld [vmem:[%s8 + $0x3c] sm:$0xf]
    %v2243 = vpack.c.bf16 %v2225, %v2225
    %v2244 = vld [vmem:[%s9 + $0x5] sm:$0x1]
    %v2246 = vlaneseq
    %v2247 = vshrl.u32 %v2246, 7
    %v2248 = vsub.s32 0, %v2247
    %v2249 = vrot.slane %v2244, %v2248
    %v2267 = vunpack.c.l.b16 %v2227
    %v2268 = vunpack.c.l.b16 %v2228
    %v2269 = vunpack.c.l.b16 %v2229
    %v2270 = vunpack.c.l.b16 %v2230
    %v2271 = vunpack.c.l.b16 %v2231
    %v2272 = vunpack.c.l.b16 %v2232
    %v2273 = vunpack.c.l.b16 %v2233
    %v2274 = vunpack.c.l.b16 %v2234
    %v2275 = vunpack.c.l.b16 %v2235
    %v2276 = vunpack.c.l.b16 %v2236
    %v2277 = vunpack.c.l.b16 %v2237
    %v2278 = vunpack.c.l.b16 %v2238
    %v2279 = vunpack.c.l.b16 %v2239
    %v2280 = vunpack.c.l.b16 %v2240
    %v2281 = vunpack.c.l.b16 %v2241
    %v2282 = vunpack.c.l.b16 %v2242
    %v2283 = vpack.c.b16 %v2268, %v2267
    %v2284 = vpack.c.b16 %v2270, %v2269
    %v2285 = vpack.c.b16 %v2272, %v2271
    %v2286 = vpack.c.b16 %v2274, %v2273
    %v2287 = vpack.c.b16 %v2276, %v2275
    %v2288 = vpack.c.b16 %v2278, %v2277
    %v2289 = vpack.c.b16 %v2280, %v2279
    %v2290 = vpack.c.b16 %v2282, %v2281
    %2299 = vmatprep.subr.bf16.mxu0 0
    %2300 = vmatpush1.bf16.msra.mxu0 %v2283
    %2301 = vmatprep.subr.bf16.mxu0 0
    %2302 = vmatpush1.bf16.msra.mxu0 %v2284
    %2303 = vmatprep.subr.bf16.mxu0 0
    %2304 = vmatpush1.bf16.msra.mxu0 %v2285
    %2305 = vmatprep.subr.bf16.mxu0 0
    %2306 = vmatpush1.bf16.msra.mxu0 %v2286
    %2307 = vmatprep.subr.bf16.mxu0 0
    %2308 = vmatpush1.bf16.msra.mxu0 %v2287
    %2309 = vmatprep.subr.bf16.mxu0 0
    %2310 = vmatpush1.bf16.msra.mxu0 %v2288
    %2311 = vmatprep.subr.bf16.mxu0 0
    %2312 = vmatpush1.bf16.msra.mxu0 %v2289
    %2313 = vmatprep.subr.bf16.mxu0 0
    %2314 = vmatpush1.bf16.msra.mxu0 %v2290
    %2315 = vmatprep.subr.bf16.mxu0 0
    %2316 = vmatpush1.bf16.msra.mxu0 0
    %2317 = vmatprep.subr.bf16.mxu0 0
    %2318 = vmatpush1.bf16.msra.mxu0 0
    %2319 = vmatprep.subr.bf16.mxu0 0
    %2320 = vmatpush1.bf16.msra.mxu0 0
    %2321 = vmatprep.subr.bf16.mxu0 0
    %2322 = vmatpush1.bf16.msra.mxu0 0
    %2323 = vmatprep.subr.bf16.mxu0 0
    %2324 = vmatpush1.bf16.msra.mxu0 0
    %2325 = vmatprep.subr.bf16.mxu0 0
    %2326 = vmatpush1.bf16.msra.mxu0 0
    %2327 = vmatprep.subr.bf16.mxu0 0
    %2328 = vmatpush1.bf16.msra.mxu0 0
    %2329 = vmatprep.subr.bf16.mxu0 0
    %2330 = vmatpush1.bf16.msra.mxu0 0
    %2331 = vmatprep.mubr.bf16.mxu0 0
    %2332 = vmatmul.mubr.bf16.gmra.mrb[0].mxu0 %v2243
    %v2333 = vpop.f32.mrb[0].mxu0
    %v2334 = vadd.f32 %v2249, %v2333
    %v2335 = vpop.f32.mrb[0].mxu0
    %v2336 = vpop.f32.mrb[0].mxu0
    %v2337 = vpop.f32.mrb[0].mxu0
    %2338 = vdwg.mxu0
    %2339 = vst [vmem:[#allocation12] sm:$0xff] %v2334
    // Predicated region
    $region62: #{diffusion_policy_forward.1} parent=1 // pred_check
      _
    $region63: #{diffusion_policy_forward.1} parent=1 // pred_check_branch
      %2341 = sbr.rel (0) target = $region65
    $region64: #{diffusion_policy_forward.1} parent=1 // pred_region
      %s2343 = ssub.s32 128, 128
      %2344 = vsyncadd [#allocation4], %s2343
      %s2346 = sshll.u32 [#allocation11], 4
      %s2347 = int_to_ptr.vmem [resolvable:$true] %s2346
      %2349 = dma.vmem_to_hbm [thread:$0]  %s2347, 128, %s10, [#allocation4]
    $region65: #{diffusion_policy_forward.1} parent=1 // pred_fallthru
      _
    // Predicated region
    $region66: #{diffusion_policy_forward.1} parent=1 // pred_check
      _
    $region67: #{diffusion_policy_forward.1} parent=1 // pred_check_branch
      %2351 = sbr.rel (0) target = $region69
    $region68: #{diffusion_policy_forward.1} parent=1 // pred_region
      %s2353 = ssub.s32 128, 128
      %2354 = vsyncadd [#allocation13], %s2353
      %s2356 = sshll.u32 [#allocation12], 4
      %s2357 = int_to_ptr.vmem [resolvable:$true] %s2356
      %2359 = dma.vmem_to_hbm [thread:$0]  %s2357, 128, %s11, [#allocation13]
    $region69: #{diffusion_policy_forward.1} parent=1 // pred_fallthru
      _
    // Predicated region
    $region70: #{diffusion_policy_forward.1} parent=1 // pred_check
      _
    $region71: #{diffusion_policy_forward.1} parent=1 // pred_check_branch
      %2361 = sbr.rel (0) target = $region73
    $region72: #{diffusion_policy_forward.1} parent=1 // pred_region
      %2362 = dma.done [#allocation4], 128
    $region73: #{diffusion_policy_forward.1} parent=1 // pred_fallthru
      _
    // Predicated region
    $region74: #{diffusion_policy_forward.1} parent=1 // pred_check
      _
    $region75: #{diffusion_policy_forward.1} parent=1 // pred_check_branch
      %2364 = sbr.rel (0) target = $region77
    $region76: #{diffusion_policy_forward.1} parent=1 // pred_region
      %2365 = dma.done [#allocation13], 128
    $region77: #{diffusion_policy_forward.1} parent=1 // pred_fallthru
      _
    %2366 = vsyncpa [#allocation3], 1
    %2367 = vsyncpa [#allocation6], 1
    %2368 = vsyncpa [#allocation9], 1
    %2369 = vsyncpa [#allocation4], 1
    %2370 = vsyncpa [#allocation13], 1

</llo_original>
